<compile_context>
chip_gen: v7x
topology: tpu7x:2x2x1
jax: 0.10.0
libtpu: 0.0.40
codegen_flags: <defaults>
</compile_context>

<pallas_src>
import jax
import jax.numpy as jnp
from jax.experimental import pallas as pl
from jax.experimental.pallas import tpu as pltpu

# ---- model hyper-params ----
NUM_EMBEDDING = 100
EMBEDDING_DIM = 32
HIDD = 50            # self.hidd
SEQ = 30             # fixed by x.view(-1, 30 * self.hidd)
CLASS_NUM = 4
BATCH = 2
J = SEQ * NUM_EMBEDDING          # 3000 flat (position, vocab) columns of the folded matrix

# ---- small-parameter pack layout (all row offsets 8-aligned) ----
_B2_ROW = 0          # b2 -> pack[0,       :128]
_W3_ROW = 8          # w3 -> pack[8:136,   :64]
_B3_ROW = 136        # b3 -> pack[136,     :64]
_W4_ROW = 144        # w4 -> pack[144:208, :4]
_B4_ROW = 208        # b4 -> pack[208,     :4]
_PACK_ROWS = 216


# ---------------- fused Pallas kernel ----------------
def fused_kernel(onehot_ref, m_ref, pack_ref, o_ref):
    # Head layer 1 (embedding gather + layer1 + Linear(1500,128) all pre-folded into m_ref):
    # single bf16 MXU contraction, f32 accumulation.
    h2 = jnp.dot(onehot_ref[...], m_ref[...], preferred_element_type=jnp.float32)   # (B, 128)
    h2 = jnp.tanh(h2 + pack_ref[_B2_ROW:_B2_ROW + 1, :])

    # Head layer 2: Linear(128, 64) + Tanh (tiny f32 matmul, weights sliced from the pack).
    w3 = pack_ref[_W3_ROW:_W3_ROW + 128, 0:64]
    b3 = pack_ref[_B3_ROW:_B3_ROW + 1, 0:64]
    h3 = jnp.tanh(jnp.dot(h2, w3, preferred_element_type=jnp.float32) + b3)         # (B, 64)

    # Head layer 3: Linear(64, class_num).
    w4 = pack_ref[_W4_ROW:_W4_ROW + 64, 0:CLASS_NUM]
    b4 = pack_ref[_B4_ROW:_B4_ROW + 1, 0:CLASS_NUM]
    o_ref[...] = jnp.dot(h3, w4, preferred_element_type=jnp.float32) + b4           # (B, C)


_VMEM = pl.BlockSpec(memory_space=pltpu.MemorySpace.VMEM)


# ---------------- parameter preparation (once per param update, outside the hot path) ----------------
def prepare_params(p):
    hi = jax.lax.Precision.HIGHEST
    # Fold Embedding -> Linear(E,50)+Tanh into a per-vocab-row table.
    table2 = jnp.tanh(jnp.dot(p["embedding"], p["w1"], precision=hi) + p["b1"])      # (V, 50)
    # Fold that table into the first head Linear: M_flat[s*V+v,:] = table2[v,:] @ w2[s].
    w2r = p["w2"].reshape(SEQ, HIDD, 128)                                            # (S, 50, 128)
    m3 = jnp.einsum("vh,shk->svk", table2, w2r, precision=hi)                        # (S, V, 128)
    m_flat = m3.reshape(J, 128).astype(jnp.bfloat16)                                 # (3000, 128) bf16

    # Pack the small parameters into one lane-dense f32 buffer.
    pack = jnp.zeros((_PACK_ROWS, 128), jnp.float32)
    pack = pack.at[_B2_ROW, :128].set(p["b2"][0])
    pack = pack.at[_W3_ROW:_W3_ROW + 128, 0:64].set(p["w3"])
    pack = pack.at[_B3_ROW, 0:64].set(p["b3"][0])
    pack = pack.at[_W4_ROW:_W4_ROW + 64, 0:CLASS_NUM].set(p["w4"])
    pack = pack.at[_B4_ROW, 0:CLASS_NUM].set(p["b4"][0])
    return {"m_flat": m_flat, "pack": pack}


# ---------------- forward wrapper: one fused pallas_call ----------------
def model_forward(x_idx, prep):
    B, S = x_idx.shape
    # Flat (position, vocab) one-hot keys: key[b,s] = s*V + x[b,s]; each column j of the
    # (B, S*V) one-hot is hit by at most one s, so `any` over s is exact.  This is a trivial
    # fused iota/compare in XLA (~12 KB result); all heavy math stays in the Pallas kernel.
    keys = x_idx.astype(jnp.int32) + jnp.arange(S, dtype=jnp.int32)[None, :] * NUM_EMBEDDING
    onehot = (keys[:, :, None] == jnp.arange(J, dtype=jnp.int32)[None, None, :]).any(axis=1)
    onehot = onehot.astype(jnp.bfloat16)                                             # (B, J) 0/1

    logits = pl.pallas_call(
        fused_kernel,
        out_shape=jax.ShapeDtypeStruct((B, CLASS_NUM), jnp.float32),
        in_specs=[_VMEM, _VMEM, _VMEM],
        out_specs=_VMEM,
    )(onehot, prep["m_flat"], prep["pack"])
    return logits


# ---------------- deterministic parameter init (torch-like) ----------------
def init_params(key):
    ks = jax.random.split(key, 9)

    def linear(kw, kb, fan_in, fan_out):
        bound = 1.0 / jnp.sqrt(jnp.float32(fan_in))
        w = jax.random.uniform(kw, (fan_in, fan_out), jnp.float32, -bound, bound)
        b = jax.random.uniform(kb, (1, fan_out), jnp.float32, -bound, bound)
        return w, b

    params = {}
    params["embedding"] = jax.random.normal(
        ks[0], (NUM_EMBEDDING, EMBEDDING_DIM), jnp.float32
    )
    params["w1"], params["b1"] = linear(ks[1], ks[2], EMBEDDING_DIM, HIDD)
    params["w2"], params["b2"] = linear(ks[3], ks[4], SEQ * HIDD, 128)
    params["w3"], params["b3"] = linear(ks[5], ks[6], 128, 64)
    params["w4"], params["b4"] = linear(ks[7], ks[8], 64, CLASS_NUM)
    return params


# ---------------- pure-JAX f32 reference (mirrors the PyTorch forward) ----------------
def reference_forward(x_idx, p):
    emb = jnp.take(p["embedding"], x_idx, axis=0)
    h1 = jnp.tanh(emb.reshape(-1, EMBEDDING_DIM) @ p["w1"] + p["b1"])
    h1 = h1.reshape(-1, SEQ * HIDD)
    h2 = jnp.tanh(h1 @ p["w2"] + p["b2"])
    h3 = jnp.tanh(h2 @ p["w3"] + p["b3"])
    return h3 @ p["w4"] + p["b4"]


if __name__ == "__main__":
    key = jax.random.PRNGKey(0)
    k_param, k_x = jax.random.split(key)

    params = init_params(k_param)
    prep = jax.tree_util.tree_map(jnp.asarray, prepare_params(params))
    x_idx = jax.random.randint(k_x, (BATCH, SEQ), 0, NUM_EMBEDDING, dtype=jnp.int32)

    fwd = jax.jit(model_forward)
    logits = jax.block_until_ready(fwd(x_idx, prep))

    ref = reference_forward(x_idx, params)
    assert logits.shape == (BATCH, CLASS_NUM)
    # Tolerance loosened vs. the pure-f32 reference because the folded weight matrix is
    # stored in bf16 (expected logit shift ~1e-3); a real bug would be O(0.1+).
    assert jnp.allclose(logits, ref, atol=2e-2, rtol=2e-2), (logits, ref)

    print("KERNEL_OK")
</pallas_src>

<mosaic_0001>
module attributes {stable_mosaic.version = 11 : i64} {
  func.func @fused_kernel(%arg0: memref<2x3000xbf16, #tpu.memory_space<vmem>>, %arg1: memref<3000x128xbf16, #tpu.memory_space<vmem>>, %arg2: memref<216x128xf32, #tpu.memory_space<vmem>>, %arg3: memref<2x4xf32, #tpu.memory_space<vmem>>) attributes {dimension_semantics = [], scalar_prefetch = 0 : i64, scratch_operands = 0 : i64, tpu.core_type = #tpu.core_type<tc>} {
    %c0 = arith.constant 0 : index
    %c0_0 = arith.constant 0 : index
    %0 = vector.load %arg0[%c0, %c0_0] : memref<2x3000xbf16, #tpu.memory_space<vmem>>, vector<2x3000xbf16>
    %c0_1 = arith.constant 0 : index
    %c0_2 = arith.constant 0 : index
    %1 = vector.load %arg1[%c0_1, %c0_2] : memref<3000x128xbf16, #tpu.memory_space<vmem>>, vector<3000x128xbf16>
    %cst = arith.constant dense<0.000000e+00> : vector<2x128xf32>
    %2 = tpu.matmul %0, %1, %cst {dimension_numbers = #tpu.dot_dimension_numbers<[1], [0], [0], [1], [0, 0, 1, 1], [], []>} : vector<2x3000xbf16>, vector<3000x128xbf16>, vector<2x128xf32> -> vector<2x128xf32>
    %c0_3 = arith.constant 0 : index
    %c0_4 = arith.constant 0 : index
    %3 = vector.load %arg2[%c0_3, %c0_4] : memref<216x128xf32, #tpu.memory_space<vmem>>, vector<1x128xf32>
    %4 = vector.broadcast %3 : vector<1x128xf32> to vector<2x128xf32>
    %5 = arith.addf %2, %4 : vector<2x128xf32>
    %6 = math.tanh %5 : vector<2x128xf32>
    %c8 = arith.constant 8 : index
    %c0_5 = arith.constant 0 : index
    %7 = vector.load %arg2[%c8, %c0_5] : memref<216x128xf32, #tpu.memory_space<vmem>>, vector<128x64xf32>
    %c136 = arith.constant 136 : index
    %c0_6 = arith.constant 0 : index
    %8 = vector.load %arg2[%c136, %c0_6] : memref<216x128xf32, #tpu.memory_space<vmem>>, vector<1x64xf32>
    %cst_7 = arith.constant dense<0.000000e+00> : vector<2x64xf32>
    %9 = tpu.matmul %6, %7, %cst_7 {dimension_numbers = #tpu.dot_dimension_numbers<[1], [0], [0], [1], [0, 0, 1, 1], [], []>} : vector<2x128xf32>, vector<128x64xf32>, vector<2x64xf32> -> vector<2x64xf32>
    %10 = vector.broadcast %8 : vector<1x64xf32> to vector<2x64xf32>
    %11 = arith.addf %9, %10 : vector<2x64xf32>
    %12 = math.tanh %11 : vector<2x64xf32>
    %c144 = arith.constant 144 : index
    %c0_8 = arith.constant 0 : index
    %13 = vector.load %arg2[%c144, %c0_8] : memref<216x128xf32, #tpu.memory_space<vmem>>, vector<64x4xf32>
    %c208 = arith.constant 208 : index
    %c0_9 = arith.constant 0 : index
    %14 = vector.load %arg2[%c208, %c0_9] : memref<216x128xf32, #tpu.memory_space<vmem>>, vector<1x4xf32>
    %cst_10 = arith.constant dense<0.000000e+00> : vector<2x4xf32>
    %15 = tpu.matmul %12, %13, %cst_10 {dimension_numbers = #tpu.dot_dimension_numbers<[1], [0], [0], [1], [0, 0, 1, 1], [], []>} : vector<2x64xf32>, vector<64x4xf32>, vector<2x4xf32> -> vector<2x4xf32>
    %16 = vector.broadcast %14 : vector<1x4xf32> to vector<2x4xf32>
    %17 = arith.addf %15, %16 : vector<2x4xf32>
    %c0_11 = arith.constant 0 : index
    %c0_12 = arith.constant 0 : index
    %18 = vector.load %arg3[%c0_11, %c0_12] : memref<2x4xf32, #tpu.memory_space<vmem>>, vector<2x4xf32>
    tpu.vector_store %arg3[%c0_11, %c0_12], %17 {strides = array<i32>} : memref<2x4xf32, #tpu.memory_space<vmem>>, vector<2x4xf32>,
    return
  }
}

</mosaic_0001>

<llo_original>
// kernel: model_forward.1
$region0: #{model_forward.1}
  #allocation0 [shape = 'u32[]', space=smem, size = 0x4, offset = 0x4, fixed_abs, tag = 'smem constant byte address 0x4 - core index']
  #allocation1 [shape = 'u32[144,128]{1,0:T(1,128)}', space=vmem, size = 0x12000, scoped, tag = 'internal scratch']
  %s0 = inlined_call_operand.vmem [shape: bf16[2,3000], index: 0, kind: input, shape index: {}]
  %s1 = inlined_call_operand.hbm [shape: bf16[3000,128], index: 1, kind: input, shape index: {}]
  %s2 = inlined_call_operand.hbm [shape: f32[216,128], index: 2, kind: input, shape index: {}]
  %s3 = inlined_call_operand.hbm [shape: f32[2,4], index: 3, kind: output, shape index: {}]
  %s4 = sld [smem:[#allocation0]]
  $region30: #{model_forward.1} parent=0
    _
  %s6 = ssub.s32 1, %s4
  %s7 = scalar_select 0, %s6, %s4
  $region1: #{model_forward.1} parent=0
    #allocation2 [shape = 'u8[768000]{0}', space=vmem, size = 0xbb800, scoped, tag = 'input window, operand 1, single buffered']
    #allocation3 [shape = 's32[1]{0}', space=sflag, size = 0x4, scoped, tag = 'scoped memory for model_forward.1']
    #allocation4 [shape = 's32[1]{0}', space=sflag, size = 0x4, scoped, tag = 'scoped memory for model_forward.1']
    #allocation5 [shape = 'u8[110592]{0}', space=vmem, size = 0x1b000, scoped, tag = 'input window, operand 2, single buffered']
    #allocation6 [shape = 's32[1]{0}', space=sflag, size = 0x4, scoped, tag = 'scoped memory for model_forward.1']
    #allocation7 [shape = 'u8[1024]{0}', space=vmem, size = 0x400, scoped, tag = 'output window, operand 0, single buffered']
    %8 = vsyncpa [#allocation3], 0
    %9 = vsyncpa [#allocation6], 0
    %10 = vsyncpa [#allocation4], 0
    // Predicated region
    $region2: #{model_forward.1} parent=1 // pred_check
      _
    $region3: #{model_forward.1} parent=1 // pred_check_branch
      %12 = sbr.rel (0) target = $region5
    $region4: #{model_forward.1} parent=1 // pred_region
      _
    $region5: #{model_forward.1} parent=1 // pred_fallthru
      _
    // Predicated region
    $region6: #{model_forward.1} parent=1 // pred_check
      _
    $region7: #{model_forward.1} parent=1 // pred_check_branch
      %14 = sbr.rel (0) target = $region9
    $region8: #{model_forward.1} parent=1 // pred_region
      %s16 = ssub.s32 24000, 24000
      %17 = vsyncadd [#allocation3], %s16
      %s18 = sshll.u32 [#allocation2], 4
      %s19 = int_to_ptr.vmem [resolvable:$true] %s18
      %24 = dma.hbm_to_vmem [thread:$0]  %s1, 24000, %s19, [#allocation3], 64, 64, 4
    $region9: #{model_forward.1} parent=1 // pred_fallthru
      _
    // Predicated region
    $region10: #{model_forward.1} parent=1 // pred_check
      _
    $region11: #{model_forward.1} parent=1 // pred_check_branch
      %26 = sbr.rel (0) target = $region13
    $region12: #{model_forward.1} parent=1 // pred_region
      %s28 = ssub.s32 3456, 3456
      %29 = vsyncadd [#allocation6], %s28
      %s30 = sshll.u32 [#allocation5], 4
      %s31 = int_to_ptr.vmem [resolvable:$true] %s30
      %36 = dma.hbm_to_vmem [thread:$0]  %s2, 3456, %s31, [#allocation6], 128, 128, 8
    $region13: #{model_forward.1} parent=1 // pred_fallthru
      _
    // Predicated region
    $region14: #{model_forward.1} parent=1 // pred_check
      _
    $region15: #{model_forward.1} parent=1 // pred_check_branch
      %38 = sbr.rel (0) target = $region17
    $region16: #{model_forward.1} parent=1 // pred_region
      %39 = dma.done [#allocation3], 24000
    $region17: #{model_forward.1} parent=1 // pred_fallthru
      _
    // Predicated region
    $region18: #{model_forward.1} parent=1 // pred_check
      _
    $region19: #{model_forward.1} parent=1 // pred_check_branch
      %41 = sbr.rel (0) target = $region21
    $region20: #{model_forward.1} parent=1 // pred_region
      %42 = dma.done [#allocation6], 3456
    $region21: #{model_forward.1} parent=1 // pred_fallthru
      _
    %v44 = vld [vmem:[%s0] sm:$0xff]
    %v45 = vld [vmem:[%s0 + $0x8] sm:$0xff]
    %v46 = vld [vmem:[%s0 + $0x10] sm:$0xff]
    %v47 = vld [vmem:[#allocation2] sm:$0xf]
    %v48 = vld [vmem:[#allocation2 + $0x4] sm:$0xf]
    %v49 = vld [vmem:[#allocation2 + $0x8] sm:$0xf]
    %v50 = vld [vmem:[#allocation2 + $0xc] sm:$0xf]
    %v51 = vld [vmem:[#allocation2 + $0x10] sm:$0xf]
    %v52 = vld [vmem:[#allocation2 + $0x14] sm:$0xf]
    %v53 = vld [vmem:[#allocation2 + $0x18] sm:$0xf]
    %v54 = vld [vmem:[#allocation2 + $0x1c] sm:$0xf]
    %v55 = vld [vmem:[#allocation2 + $0x20] sm:$0xf]
    %v56 = vld [vmem:[#allocation2 + $0x24] sm:$0xf]
    %v57 = vld [vmem:[#allocation2 + $0x28] sm:$0xf]
    %v58 = vld [vmem:[#allocation2 + $0x2c] sm:$0xf]
    %v59 = vld [vmem:[#allocation2 + $0x30] sm:$0xf]
    %v60 = vld [vmem:[#allocation2 + $0x34] sm:$0xf]
    %v61 = vld [vmem:[#allocation2 + $0x38] sm:$0xf]
    %v62 = vld [vmem:[#allocation2 + $0x3c] sm:$0xf]
    %v63 = vld [vmem:[#allocation2 + $0x40] sm:$0xf]
    %v64 = vld [vmem:[#allocation2 + $0x44] sm:$0xf]
    %v65 = vld [vmem:[#allocation2 + $0x48] sm:$0xf]
    %v66 = vld [vmem:[#allocation2 + $0x4c] sm:$0xf]
    %v67 = vld [vmem:[#allocation2 + $0x50] sm:$0xf]
    %v68 = vld [vmem:[#allocation2 + $0x54] sm:$0xf]
    %v69 = vld [vmem:[#allocation2 + $0x58] sm:$0xf]
    %v70 = vld [vmem:[#allocation2 + $0x5c] sm:$0xf]
    %v71 = vld [vmem:[#allocation2 + $0x60] sm:$0xf]
    %v72 = vld [vmem:[#allocation2 + $0x64] sm:$0xf]
    %v73 = vld [vmem:[#allocation2 + $0x68] sm:$0xf]
    %v74 = vld [vmem:[#allocation2 + $0x6c] sm:$0xf]
    %v75 = vld [vmem:[#allocation2 + $0x70] sm:$0xf]
    %v76 = vld [vmem:[#allocation2 + $0x74] sm:$0xf]
    %v77 = vld [vmem:[#allocation2 + $0x78] sm:$0xf]
    %v78 = vld [vmem:[#allocation2 + $0x7c] sm:$0xf]
    %v79 = vld [vmem:[#allocation2 + $0x80] sm:$0xf]
    %v80 = vld [vmem:[#allocation2 + $0x84] sm:$0xf]
    %v81 = vld [vmem:[#allocation2 + $0x88] sm:$0xf]
    %v82 = vld [vmem:[#allocation2 + $0x8c] sm:$0xf]
    %v83 = vld [vmem:[#allocation2 + $0x90] sm:$0xf]
    %v84 = vld [vmem:[#allocation2 + $0x94] sm:$0xf]
    %v85 = vld [vmem:[#allocation2 + $0x98] sm:$0xf]
    %v86 = vld [vmem:[#allocation2 + $0x9c] sm:$0xf]
    %v87 = vld [vmem:[#allocation2 + $0xa0] sm:$0xf]
    %v88 = vld [vmem:[#allocation2 + $0xa4] sm:$0xf]
    %v89 = vld [vmem:[#allocation2 + $0xa8] sm:$0xf]
    %v90 = vld [vmem:[#allocation2 + $0xac] sm:$0xf]
    %v91 = vld [vmem:[#allocation2 + $0xb0] sm:$0xf]
    %v92 = vld [vmem:[#allocation2 + $0xb4] sm:$0xf]
    %v93 = vld [vmem:[#allocation2 + $0xb8] sm:$0xf]
    %v94 = vld [vmem:[#allocation2 + $0xbc] sm:$0xf]
    %v95 = vld [vmem:[#allocation2 + $0xc0] sm:$0xf]
    %v96 = vld [vmem:[#allocation2 + $0xc4] sm:$0xf]
    %v97 = vld [vmem:[#allocation2 + $0xc8] sm:$0xf]
    %v98 = vld [vmem:[#allocation2 + $0xcc] sm:$0xf]
    %v99 = vld [vmem:[#allocation2 + $0xd0] sm:$0xf]
    %v100 = vld [vmem:[#allocation2 + $0xd4] sm:$0xf]
    %v101 = vld [vmem:[#allocation2 + $0xd8] sm:$0xf]
    %v102 = vld [vmem:[#allocation2 + $0xdc] sm:$0xf]
    %v103 = vld [vmem:[#allocation2 + $0xe0] sm:$0xf]
    %v104 = vld [vmem:[#allocation2 + $0xe4] sm:$0xf]
    %v105 = vld [vmem:[#allocation2 + $0xe8] sm:$0xf]
    %v106 = vld [vmem:[#allocation2 + $0xec] sm:$0xf]
    %v107 = vld [vmem:[#allocation2 + $0xf0] sm:$0xf]
    %v108 = vld [vmem:[#allocation2 + $0xf4] sm:$0xf]
    %v109 = vld [vmem:[#allocation2 + $0xf8] sm:$0xf]
    %v110 = vld [vmem:[#allocation2 + $0xfc] sm:$0xf]
    %v111 = vld [vmem:[#allocation2 + $0x100] sm:$0xf]
    %v112 = vld [vmem:[#allocation2 + $0x104] sm:$0xf]
    %v113 = vld [vmem:[#allocation2 + $0x108] sm:$0xf]
    %v114 = vld [vmem:[#allocation2 + $0x10c] sm:$0xf]
    %v115 = vld [vmem:[#allocation2 + $0x110] sm:$0xf]
    %v116 = vld [vmem:[#allocation2 + $0x114] sm:$0xf]
    %v117 = vld [vmem:[#allocation2 + $0x118] sm:$0xf]
    %v118 = vld [vmem:[#allocation2 + $0x11c] sm:$0xf]
    %v119 = vld [vmem:[#allocation2 + $0x120] sm:$0xf]
    %v120 = vld [vmem:[#allocation2 + $0x124] sm:$0xf]
    %v121 = vld [vmem:[#allocation2 + $0x128] sm:$0xf]
    %v122 = vld [vmem:[#allocation2 + $0x12c] sm:$0xf]
    %v123 = vld [vmem:[#allocation2 + $0x130] sm:$0xf]
    %v124 = vld [vmem:[#allocation2 + $0x134] sm:$0xf]
    %v125 = vld [vmem:[#allocation2 + $0x138] sm:$0xf]
    %v126 = vld [vmem:[#allocation2 + $0x13c] sm:$0xf]
    %v127 = vld [vmem:[#allocation2 + $0x140] sm:$0xf]
    %v128 = vld [vmem:[#allocation2 + $0x144] sm:$0xf]
    %v129 = vld [vmem:[#allocation2 + $0x148] sm:$0xf]
    %v130 = vld [vmem:[#allocation2 + $0x14c] sm:$0xf]
    %v131 = vld [vmem:[#allocation2 + $0x150] sm:$0xf]
    %v132 = vld [vmem:[#allocation2 + $0x154] sm:$0xf]
    %v133 = vld [vmem:[#allocation2 + $0x158] sm:$0xf]
    %v134 = vld [vmem:[#allocation2 + $0x15c] sm:$0xf]
    %v135 = vld [vmem:[#allocation2 + $0x160] sm:$0xf]
    %v136 = vld [vmem:[#allocation2 + $0x164] sm:$0xf]
    %v137 = vld [vmem:[#allocation2 + $0x168] sm:$0xf]
    %v138 = vld [vmem:[#allocation2 + $0x16c] sm:$0xf]
    %v139 = vld [vmem:[#allocation2 + $0x170] sm:$0xf]
    %v140 = vld [vmem:[#allocation2 + $0x174] sm:$0xf]
    %v141 = vld [vmem:[#allocation2 + $0x178] sm:$0xf]
    %v142 = vld [vmem:[#allocation2 + $0x17c] sm:$0xf]
    %v143 = vld [vmem:[#allocation2 + $0x180] sm:$0xf]
    %v144 = vld [vmem:[#allocation2 + $0x184] sm:$0xf]
    %v145 = vld [vmem:[#allocation2 + $0x188] sm:$0xf]
    %v146 = vld [vmem:[#allocation2 + $0x18c] sm:$0xf]
    %v147 = vld [vmem:[#allocation2 + $0x190] sm:$0xf]
    %v148 = vld [vmem:[#allocation2 + $0x194] sm:$0xf]
    %v149 = vld [vmem:[#allocation2 + $0x198] sm:$0xf]
    %v150 = vld [vmem:[#allocation2 + $0x19c] sm:$0xf]
    %v151 = vld [vmem:[#allocation2 + $0x1a0] sm:$0xf]
    %v152 = vld [vmem:[#allocation2 + $0x1a4] sm:$0xf]
    %v153 = vld [vmem:[#allocation2 + $0x1a8] sm:$0xf]
    %v154 = vld [vmem:[#allocation2 + $0x1ac] sm:$0xf]
    %v155 = vld [vmem:[#allocation2 + $0x1b0] sm:$0xf]
    %v156 = vld [vmem:[#allocation2 + $0x1b4] sm:$0xf]
    %v157 = vld [vmem:[#allocation2 + $0x1b8] sm:$0xf]
    %v158 = vld [vmem:[#allocation2 + $0x1bc] sm:$0xf]
    %v159 = vld [vmem:[#allocation2 + $0x1c0] sm:$0xf]
    %v160 = vld [vmem:[#allocation2 + $0x1c4] sm:$0xf]
    %v161 = vld [vmem:[#allocation2 + $0x1c8] sm:$0xf]
    %v162 = vld [vmem:[#allocation2 + $0x1cc] sm:$0xf]
    %v163 = vld [vmem:[#allocation2 + $0x1d0] sm:$0xf]
    %v164 = vld [vmem:[#allocation2 + $0x1d4] sm:$0xf]
    %v165 = vld [vmem:[#allocation2 + $0x1d8] sm:$0xf]
    %v166 = vld [vmem:[#allocation2 + $0x1dc] sm:$0xf]
    %v167 = vld [vmem:[#allocation2 + $0x1e0] sm:$0xf]
    %v168 = vld [vmem:[#allocation2 + $0x1e4] sm:$0xf]
    %v169 = vld [vmem:[#allocation2 + $0x1e8] sm:$0xf]
    %v170 = vld [vmem:[#allocation2 + $0x1ec] sm:$0xf]
    %v171 = vld [vmem:[#allocation2 + $0x1f0] sm:$0xf]
    %v172 = vld [vmem:[#allocation2 + $0x1f4] sm:$0xf]
    %v173 = vld [vmem:[#allocation2 + $0x1f8] sm:$0xf]
    %v174 = vld [vmem:[#allocation2 + $0x1fc] sm:$0xf]
    %v175 = vld [vmem:[#allocation2 + $0x200] sm:$0xf]
    %v176 = vld [vmem:[#allocation2 + $0x204] sm:$0xf]
    %v177 = vld [vmem:[#allocation2 + $0x208] sm:$0xf]
    %v178 = vld [vmem:[#allocation2 + $0x20c] sm:$0xf]
    %v179 = vld [vmem:[#allocation2 + $0x210] sm:$0xf]
    %v180 = vld [vmem:[#allocation2 + $0x214] sm:$0xf]
    %v181 = vld [vmem:[#allocation2 + $0x218] sm:$0xf]
    %v182 = vld [vmem:[#allocation2 + $0x21c] sm:$0xf]
    %v183 = vld [vmem:[#allocation2 + $0x220] sm:$0xf]
    %v184 = vld [vmem:[#allocation2 + $0x224] sm:$0xf]
    %v185 = vld [vmem:[#allocation2 + $0x228] sm:$0xf]
    %v186 = vld [vmem:[#allocation2 + $0x22c] sm:$0xf]
    %v187 = vld [vmem:[#allocation2 + $0x230] sm:$0xf]
    %v188 = vld [vmem:[#allocation2 + $0x234] sm:$0xf]
    %v189 = vld [vmem:[#allocation2 + $0x238] sm:$0xf]
    %v190 = vld [vmem:[#allocation2 + $0x23c] sm:$0xf]
    %v191 = vld [vmem:[#allocation2 + $0x240] sm:$0xf]
    %v192 = vld [vmem:[#allocation2 + $0x244] sm:$0xf]
    %v193 = vld [vmem:[#allocation2 + $0x248] sm:$0xf]
    %v194 = vld [vmem:[#allocation2 + $0x24c] sm:$0xf]
    %v195 = vld [vmem:[#allocation2 + $0x250] sm:$0xf]
    %v196 = vld [vmem:[#allocation2 + $0x254] sm:$0xf]
    %v197 = vld [vmem:[#allocation2 + $0x258] sm:$0xf]
    %v198 = vld [vmem:[#allocation2 + $0x25c] sm:$0xf]
    %v199 = vld [vmem:[#allocation2 + $0x260] sm:$0xf]
    %v200 = vld [vmem:[#allocation2 + $0x264] sm:$0xf]
    %v201 = vld [vmem:[#allocation2 + $0x268] sm:$0xf]
    %v202 = vld [vmem:[#allocation2 + $0x26c] sm:$0xf]
    %v203 = vld [vmem:[#allocation2 + $0x270] sm:$0xf]
    %v204 = vld [vmem:[#allocation2 + $0x274] sm:$0xf]
    %v205 = vld [vmem:[#allocation2 + $0x278] sm:$0xf]
    %v206 = vld [vmem:[#allocation2 + $0x27c] sm:$0xf]
    %v207 = vld [vmem:[#allocation2 + $0x280] sm:$0xf]
    %v208 = vld [vmem:[#allocation2 + $0x284] sm:$0xf]
    %v209 = vld [vmem:[#allocation2 + $0x288] sm:$0xf]
    %v210 = vld [vmem:[#allocation2 + $0x28c] sm:$0xf]
    %v211 = vld [vmem:[#allocation2 + $0x290] sm:$0xf]
    %v212 = vld [vmem:[#allocation2 + $0x294] sm:$0xf]
    %v213 = vld [vmem:[#allocation2 + $0x298] sm:$0xf]
    %v214 = vld [vmem:[#allocation2 + $0x29c] sm:$0xf]
    %v215 = vld [vmem:[#allocation2 + $0x2a0] sm:$0xf]
    %v216 = vld [vmem:[#allocation2 + $0x2a4] sm:$0xf]
    %v217 = vld [vmem:[#allocation2 + $0x2a8] sm:$0xf]
    %v218 = vld [vmem:[#allocation2 + $0x2ac] sm:$0xf]
    %v219 = vld [vmem:[#allocation2 + $0x2b0] sm:$0xf]
    %v220 = vld [vmem:[#allocation2 + $0x2b4] sm:$0xf]
    %v221 = vld [vmem:[#allocation2 + $0x2b8] sm:$0xf]
    %v222 = vld [vmem:[#allocation2 + $0x2bc] sm:$0xf]
    %v223 = vld [vmem:[#allocation2 + $0x2c0] sm:$0xf]
    %v224 = vld [vmem:[#allocation2 + $0x2c4] sm:$0xf]
    %v225 = vld [vmem:[#allocation2 + $0x2c8] sm:$0xf]
    %v226 = vld [vmem:[#allocation2 + $0x2cc] sm:$0xf]
    %v227 = vld [vmem:[#allocation2 + $0x2d0] sm:$0xf]
    %v228 = vld [vmem:[#allocation2 + $0x2d4] sm:$0xf]
    %v229 = vld [vmem:[#allocation2 + $0x2d8] sm:$0xf]
    %v230 = vld [vmem:[#allocation2 + $0x2dc] sm:$0xf]
    %v231 = vld [vmem:[#allocation2 + $0x2e0] sm:$0xf]
    %v232 = vld [vmem:[#allocation2 + $0x2e4] sm:$0xf]
    %v233 = vld [vmem:[#allocation2 + $0x2e8] sm:$0xf]
    %v234 = vld [vmem:[#allocation2 + $0x2ec] sm:$0xf]
    %v235 = vld [vmem:[#allocation2 + $0x2f0] sm:$0xf]
    %v236 = vld [vmem:[#allocation2 + $0x2f4] sm:$0xf]
    %v237 = vld [vmem:[#allocation2 + $0x2f8] sm:$0xf]
    %v238 = vld [vmem:[#allocation2 + $0x2fc] sm:$0xf]
    %v239 = vld [vmem:[#allocation2 + $0x300] sm:$0xf]
    %v240 = vld [vmem:[#allocation2 + $0x304] sm:$0xf]
    %v241 = vld [vmem:[#allocation2 + $0x308] sm:$0xf]
    %v242 = vld [vmem:[#allocation2 + $0x30c] sm:$0xf]
    %v243 = vld [vmem:[#allocation2 + $0x310] sm:$0xf]
    %v244 = vld [vmem:[#allocation2 + $0x314] sm:$0xf]
    %v245 = vld [vmem:[#allocation2 + $0x318] sm:$0xf]
    %v246 = vld [vmem:[#allocation2 + $0x31c] sm:$0xf]
    %v247 = vld [vmem:[#allocation2 + $0x320] sm:$0xf]
    %v248 = vld [vmem:[#allocation2 + $0x324] sm:$0xf]
    %v249 = vld [vmem:[#allocation2 + $0x328] sm:$0xf]
    %v250 = vld [vmem:[#allocation2 + $0x32c] sm:$0xf]
    %v251 = vld [vmem:[#allocation2 + $0x330] sm:$0xf]
    %v252 = vld [vmem:[#allocation2 + $0x334] sm:$0xf]
    %v253 = vld [vmem:[#allocation2 + $0x338] sm:$0xf]
    %v254 = vld [vmem:[#allocation2 + $0x33c] sm:$0xf]
    %v255 = vld [vmem:[#allocation2 + $0x340] sm:$0xf]
    %v256 = vld [vmem:[#allocation2 + $0x344] sm:$0xf]
    %v257 = vld [vmem:[#allocation2 + $0x348] sm:$0xf]
    %v258 = vld [vmem:[#allocation2 + $0x34c] sm:$0xf]
    %v259 = vld [vmem:[#allocation2 + $0x350] sm:$0xf]
    %v260 = vld [vmem:[#allocation2 + $0x354] sm:$0xf]
    %v261 = vld [vmem:[#allocation2 + $0x358] sm:$0xf]
    %v262 = vld [vmem:[#allocation2 + $0x35c] sm:$0xf]
    %v263 = vld [vmem:[#allocation2 + $0x360] sm:$0xf]
    %v264 = vld [vmem:[#allocation2 + $0x364] sm:$0xf]
    %v265 = vld [vmem:[#allocation2 + $0x368] sm:$0xf]
    %v266 = vld [vmem:[#allocation2 + $0x36c] sm:$0xf]
    %v267 = vld [vmem:[#allocation2 + $0x370] sm:$0xf]
    %v268 = vld [vmem:[#allocation2 + $0x374] sm:$0xf]
    %v269 = vld [vmem:[#allocation2 + $0x378] sm:$0xf]
    %v270 = vld [vmem:[#allocation2 + $0x37c] sm:$0xf]
    %v271 = vld [vmem:[#allocation2 + $0x380] sm:$0xf]
    %v272 = vld [vmem:[#allocation2 + $0x384] sm:$0xf]
    %v273 = vld [vmem:[#allocation2 + $0x388] sm:$0xf]
    %v274 = vld [vmem:[#allocation2 + $0x38c] sm:$0xf]
    %v275 = vld [vmem:[#allocation2 + $0x390] sm:$0xf]
    %v276 = vld [vmem:[#allocation2 + $0x394] sm:$0xf]
    %v277 = vld [vmem:[#allocation2 + $0x398] sm:$0xf]
    %v278 = vld [vmem:[#allocation2 + $0x39c] sm:$0xf]
    %v279 = vld [vmem:[#allocation2 + $0x3a0] sm:$0xf]
    %v280 = vld [vmem:[#allocation2 + $0x3a4] sm:$0xf]
    %v281 = vld [vmem:[#allocation2 + $0x3a8] sm:$0xf]
    %v282 = vld [vmem:[#allocation2 + $0x3ac] sm:$0xf]
    %v283 = vld [vmem:[#allocation2 + $0x3b0] sm:$0xf]
    %v284 = vld [vmem:[#allocation2 + $0x3b4] sm:$0xf]
    %v285 = vld [vmem:[#allocation2 + $0x3b8] sm:$0xf]
    %v286 = vld [vmem:[#allocation2 + $0x3bc] sm:$0xf]
    %v287 = vld [vmem:[#allocation2 + $0x3c0] sm:$0xf]
    %v288 = vld [vmem:[#allocation2 + $0x3c4] sm:$0xf]
    %v289 = vld [vmem:[#allocation2 + $0x3c8] sm:$0xf]
    %v290 = vld [vmem:[#allocation2 + $0x3cc] sm:$0xf]
    %v291 = vld [vmem:[#allocation2 + $0x3d0] sm:$0xf]
    %v292 = vld [vmem:[#allocation2 + $0x3d4] sm:$0xf]
    %v293 = vld [vmem:[#allocation2 + $0x3d8] sm:$0xf]
    %v294 = vld [vmem:[#allocation2 + $0x3dc] sm:$0xf]
    %v295 = vld [vmem:[#allocation2 + $0x3e0] sm:$0xf]
    %v296 = vld [vmem:[#allocation2 + $0x3e4] sm:$0xf]
    %v297 = vld [vmem:[#allocation2 + $0x3e8] sm:$0xf]
    %v298 = vld [vmem:[#allocation2 + $0x3ec] sm:$0xf]
    %v299 = vld [vmem:[#allocation2 + $0x3f0] sm:$0xf]
    %v300 = vld [vmem:[#allocation2 + $0x3f4] sm:$0xf]
    %v301 = vld [vmem:[#allocation2 + $0x3f8] sm:$0xf]
    %v302 = vld [vmem:[#allocation2 + $0x3fc] sm:$0xf]
    %v303 = vld [vmem:[#allocation2 + $0x400] sm:$0xf]
    %v304 = vld [vmem:[#allocation2 + $0x404] sm:$0xf]
    %v305 = vld [vmem:[#allocation2 + $0x408] sm:$0xf]
    %v306 = vld [vmem:[#allocation2 + $0x40c] sm:$0xf]
    %v307 = vld [vmem:[#allocation2 + $0x410] sm:$0xf]
    %v308 = vld [vmem:[#allocation2 + $0x414] sm:$0xf]
    %v309 = vld [vmem:[#allocation2 + $0x418] sm:$0xf]
    %v310 = vld [vmem:[#allocation2 + $0x41c] sm:$0xf]
    %v311 = vld [vmem:[#allocation2 + $0x420] sm:$0xf]
    %v312 = vld [vmem:[#allocation2 + $0x424] sm:$0xf]
    %v313 = vld [vmem:[#allocation2 + $0x428] sm:$0xf]
    %v314 = vld [vmem:[#allocation2 + $0x42c] sm:$0xf]
    %v315 = vld [vmem:[#allocation2 + $0x430] sm:$0xf]
    %v316 = vld [vmem:[#allocation2 + $0x434] sm:$0xf]
    %v317 = vld [vmem:[#allocation2 + $0x438] sm:$0xf]
    %v318 = vld [vmem:[#allocation2 + $0x43c] sm:$0xf]
    %v319 = vld [vmem:[#allocation2 + $0x440] sm:$0xf]
    %v320 = vld [vmem:[#allocation2 + $0x444] sm:$0xf]
    %v321 = vld [vmem:[#allocation2 + $0x448] sm:$0xf]
    %v322 = vld [vmem:[#allocation2 + $0x44c] sm:$0xf]
    %v323 = vld [vmem:[#allocation2 + $0x450] sm:$0xf]
    %v324 = vld [vmem:[#allocation2 + $0x454] sm:$0xf]
    %v325 = vld [vmem:[#allocation2 + $0x458] sm:$0xf]
    %v326 = vld [vmem:[#allocation2 + $0x45c] sm:$0xf]
    %v327 = vld [vmem:[#allocation2 + $0x460] sm:$0xf]
    %v328 = vld [vmem:[#allocation2 + $0x464] sm:$0xf]
    %v329 = vld [vmem:[#allocation2 + $0x468] sm:$0xf]
    %v330 = vld [vmem:[#allocation2 + $0x46c] sm:$0xf]
    %v331 = vld [vmem:[#allocation2 + $0x470] sm:$0xf]
    %v332 = vld [vmem:[#allocation2 + $0x474] sm:$0xf]
    %v333 = vld [vmem:[#allocation2 + $0x478] sm:$0xf]
    %v334 = vld [vmem:[#allocation2 + $0x47c] sm:$0xf]
    %v335 = vld [vmem:[#allocation2 + $0x480] sm:$0xf]
    %v336 = vld [vmem:[#allocation2 + $0x484] sm:$0xf]
    %v337 = vld [vmem:[#allocation2 + $0x488] sm:$0xf]
    %v338 = vld [vmem:[#allocation2 + $0x48c] sm:$0xf]
    %v339 = vld [vmem:[#allocation2 + $0x490] sm:$0xf]
    %v340 = vld [vmem:[#allocation2 + $0x494] sm:$0xf]
    %v341 = vld [vmem:[#allocation2 + $0x498] sm:$0xf]
    %v342 = vld [vmem:[#allocation2 + $0x49c] sm:$0xf]
    %v343 = vld [vmem:[#allocation2 + $0x4a0] sm:$0xf]
    %v344 = vld [vmem:[#allocation2 + $0x4a4] sm:$0xf]
    %v345 = vld [vmem:[#allocation2 + $0x4a8] sm:$0xf]
    %v346 = vld [vmem:[#allocation2 + $0x4ac] sm:$0xf]
    %v347 = vld [vmem:[#allocation2 + $0x4b0] sm:$0xf]
    %v348 = vld [vmem:[#allocation2 + $0x4b4] sm:$0xf]
    %v349 = vld [vmem:[#allocation2 + $0x4b8] sm:$0xf]
    %v350 = vld [vmem:[#allocation2 + $0x4bc] sm:$0xf]
    %v351 = vld [vmem:[#allocation2 + $0x4c0] sm:$0xf]
    %v352 = vld [vmem:[#allocation2 + $0x4c4] sm:$0xf]
    %v353 = vld [vmem:[#allocation2 + $0x4c8] sm:$0xf]
    %v354 = vld [vmem:[#allocation2 + $0x4cc] sm:$0xf]
    %v355 = vld [vmem:[#allocation2 + $0x4d0] sm:$0xf]
    %v356 = vld [vmem:[#allocation2 + $0x4d4] sm:$0xf]
    %v357 = vld [vmem:[#allocation2 + $0x4d8] sm:$0xf]
    %v358 = vld [vmem:[#allocation2 + $0x4dc] sm:$0xf]
    %v359 = vld [vmem:[#allocation2 + $0x4e0] sm:$0xf]
    %v360 = vld [vmem:[#allocation2 + $0x4e4] sm:$0xf]
    %v361 = vld [vmem:[#allocation2 + $0x4e8] sm:$0xf]
    %v362 = vld [vmem:[#allocation2 + $0x4ec] sm:$0xf]
    %v363 = vld [vmem:[#allocation2 + $0x4f0] sm:$0xf]
    %v364 = vld [vmem:[#allocation2 + $0x4f4] sm:$0xf]
    %v365 = vld [vmem:[#allocation2 + $0x4f8] sm:$0xf]
    %v366 = vld [vmem:[#allocation2 + $0x4fc] sm:$0xf]
    %v367 = vld [vmem:[#allocation2 + $0x500] sm:$0xf]
    %v368 = vld [vmem:[#allocation2 + $0x504] sm:$0xf]
    %v369 = vld [vmem:[#allocation2 + $0x508] sm:$0xf]
    %v370 = vld [vmem:[#allocation2 + $0x50c] sm:$0xf]
    %v371 = vld [vmem:[#allocation2 + $0x510] sm:$0xf]
    %v372 = vld [vmem:[#allocation2 + $0x514] sm:$0xf]
    %v373 = vld [vmem:[#allocation2 + $0x518] sm:$0xf]
    %v374 = vld [vmem:[#allocation2 + $0x51c] sm:$0xf]
    %v375 = vld [vmem:[#allocation2 + $0x520] sm:$0xf]
    %v376 = vld [vmem:[#allocation2 + $0x524] sm:$0xf]
    %v377 = vld [vmem:[#allocation2 + $0x528] sm:$0xf]
    %v378 = vld [vmem:[#allocation2 + $0x52c] sm:$0xf]
    %v379 = vld [vmem:[#allocation2 + $0x530] sm:$0xf]
    %v380 = vld [vmem:[#allocation2 + $0x534] sm:$0xf]
    %v381 = vld [vmem:[#allocation2 + $0x538] sm:$0xf]
    %v382 = vld [vmem:[#allocation2 + $0x53c] sm:$0xf]
    %v383 = vld [vmem:[#allocation2 + $0x540] sm:$0xf]
    %v384 = vld [vmem:[#allocation2 + $0x544] sm:$0xf]
    %v385 = vld [vmem:[#allocation2 + $0x548] sm:$0xf]
    %v386 = vld [vmem:[#allocation2 + $0x54c] sm:$0xf]
    %v387 = vld [vmem:[#allocation2 + $0x550] sm:$0xf]
    %v388 = vld [vmem:[#allocation2 + $0x554] sm:$0xf]
    %v389 = vld [vmem:[#allocation2 + $0x558] sm:$0xf]
    %v390 = vld [vmem:[#allocation2 + $0x55c] sm:$0xf]
    %v391 = vld [vmem:[#allocation2 + $0x560] sm:$0xf]
    %v392 = vld [vmem:[#allocation2 + $0x564] sm:$0xf]
    %v393 = vld [vmem:[#allocation2 + $0x568] sm:$0xf]
    %v394 = vld [vmem:[#allocation2 + $0x56c] sm:$0xf]
    %v395 = vld [vmem:[#allocation2 + $0x570] sm:$0xf]
    %v396 = vld [vmem:[#allocation2 + $0x574] sm:$0xf]
    %v397 = vld [vmem:[#allocation2 + $0x578] sm:$0xf]
    %v398 = vld [vmem:[#allocation2 + $0x57c] sm:$0xf]
    %v399 = vld [vmem:[#allocation2 + $0x580] sm:$0xf]
    %v400 = vld [vmem:[#allocation2 + $0x584] sm:$0xf]
    %v401 = vld [vmem:[#allocation2 + $0x588] sm:$0xf]
    %v402 = vld [vmem:[#allocation2 + $0x58c] sm:$0xf]
    %v403 = vld [vmem:[#allocation2 + $0x590] sm:$0xf]
    %v404 = vld [vmem:[#allocation2 + $0x594] sm:$0xf]
    %v405 = vld [vmem:[#allocation2 + $0x598] sm:$0xf]
    %v406 = vld [vmem:[#allocation2 + $0x59c] sm:$0xf]
    %v407 = vld [vmem:[#allocation2 + $0x5a0] sm:$0xf]
    %v408 = vld [vmem:[#allocation2 + $0x5a4] sm:$0xf]
    %v409 = vld [vmem:[#allocation2 + $0x5a8] sm:$0xf]
    %v410 = vld [vmem:[#allocation2 + $0x5ac] sm:$0xf]
    %v411 = vld [vmem:[#allocation2 + $0x5b0] sm:$0xf]
    %v412 = vld [vmem:[#allocation2 + $0x5b4] sm:$0xf]
    %v413 = vld [vmem:[#allocation2 + $0x5b8] sm:$0xf]
    %v414 = vld [vmem:[#allocation2 + $0x5bc] sm:$0xf]
    %v415 = vld [vmem:[#allocation2 + $0x5c0] sm:$0xf]
    %v416 = vld [vmem:[#allocation2 + $0x5c4] sm:$0xf]
    %v417 = vld [vmem:[#allocation2 + $0x5c8] sm:$0xf]
    %v418 = vld [vmem:[#allocation2 + $0x5cc] sm:$0xf]
    %v419 = vld [vmem:[#allocation2 + $0x5d0] sm:$0xf]
    %v420 = vld [vmem:[#allocation2 + $0x5d4] sm:$0xf]
    %v421 = vld [vmem:[#allocation2 + $0x5d8] sm:$0xf]
    %v422 = vld [vmem:[#allocation5] sm:$0x1]
    %v423 = vlaneseq
    %v424 = vshrl.u32 %v423, 7
    %v425 = vsub.s32 0, %v424
    %v426 = vrot.slane %v422, %v425
    %v430 = vcombine.high %v44, %v44
    %v432 = vunpack.c.l.s4 1966171168
    %v433 = vunpack.c.0.s8 %v432
    %v434 = vlaneseq
    %v435 = vshrl.u32 %v434, 7
    %v436 = vsub.s32 %v433, %v435
    %v437 = vrot.slane %v44, %v436
    %v439 = vunpack.c.l.s4 1966171168
    %v440 = vunpack.c.0.s8 %v439
    %v441 = vlaneseq
    %v442 = vshrl.u32 %v441, 7
    %v443 = vsub.s32 %v440, %v442
    %v444 = vrot.slane %v430, %v443
    %v445 = vcombine.high %v437, %v437
    %v446 = vcombine.high %v444, %v444
    %v448 = vunpack.c.l.s4 1966171168
    %v449 = vunpack.c.0.s8 %v448
    %v450 = vlaneseq
    %v451 = vshrl.u32 %v450, 7
    %v452 = vsub.s32 %v449, %v451
    %v453 = vrot.slane %v437, %v452
    %v455 = vunpack.c.l.s4 1966171168
    %v456 = vunpack.c.0.s8 %v455
    %v457 = vlaneseq
    %v458 = vshrl.u32 %v457, 7
    %v459 = vsub.s32 %v456, %v458
    %v460 = vrot.slane %v444, %v459
    %v462 = vunpack.c.l.s4 1966171168
    %v463 = vunpack.c.0.s8 %v462
    %v464 = vlaneseq
    %v465 = vshrl.u32 %v464, 7
    %v466 = vsub.s32 %v463, %v465
    %v467 = vrot.slane %v445, %v466
    %v469 = vunpack.c.l.s4 1966171168
    %v470 = vunpack.c.0.s8 %v469
    %v471 = vlaneseq
    %v472 = vshrl.u32 %v471, 7
    %v473 = vsub.s32 %v470, %v472
    %v474 = vrot.slane %v446, %v473
    %v475 = vcombine.high %v453, %v453
    %v476 = vcombine.high %v460, %v460
    %v477 = vcombine.high %v467, %v467
    %v478 = vcombine.high %v474, %v474
    %v479 = vcombine.high %v45, %v45
    %v481 = vunpack.c.l.s4 1966171168
    %v482 = vunpack.c.0.s8 %v481
    %v483 = vlaneseq
    %v484 = vshrl.u32 %v483, 7
    %v485 = vsub.s32 %v482, %v484
    %v486 = vrot.slane %v45, %v485
    %v488 = vunpack.c.l.s4 1966171168
    %v489 = vunpack.c.0.s8 %v488
    %v490 = vlaneseq
    %v491 = vshrl.u32 %v490, 7
    %v492 = vsub.s32 %v489, %v491
    %v493 = vrot.slane %v479, %v492
    %v494 = vcombine.high %v486, %v486
    %v495 = vcombine.high %v493, %v493
    %v497 = vunpack.c.l.s4 1966171168
    %v498 = vunpack.c.0.s8 %v497
    %v499 = vlaneseq
    %v500 = vshrl.u32 %v499, 7
    %v501 = vsub.s32 %v498, %v500
    %v502 = vrot.slane %v486, %v501
    %v504 = vunpack.c.l.s4 1966171168
    %v505 = vunpack.c.0.s8 %v504
    %v506 = vlaneseq
    %v507 = vshrl.u32 %v506, 7
    %v508 = vsub.s32 %v505, %v507
    %v509 = vrot.slane %v493, %v508
    %v511 = vunpack.c.l.s4 1966171168
    %v512 = vunpack.c.0.s8 %v511
    %v513 = vlaneseq
    %v514 = vshrl.u32 %v513, 7
    %v515 = vsub.s32 %v512, %v514
    %v516 = vrot.slane %v494, %v515
    %v518 = vunpack.c.l.s4 1966171168
    %v519 = vunpack.c.0.s8 %v518
    %v520 = vlaneseq
    %v521 = vshrl.u32 %v520, 7
    %v522 = vsub.s32 %v519, %v521
    %v523 = vrot.slane %v495, %v522
    %v524 = vcombine.high %v502, %v502
    %v525 = vcombine.high %v509, %v509
    %v526 = vcombine.high %v516, %v516
    %v527 = vcombine.high %v523, %v523
    %v528 = vcombine.high %v46, %v46
    %v530 = vunpack.c.l.s4 1966171168
    %v531 = vunpack.c.0.s8 %v530
    %v532 = vlaneseq
    %v533 = vshrl.u32 %v532, 7
    %v534 = vsub.s32 %v531, %v533
    %v535 = vrot.slane %v46, %v534
    %v537 = vunpack.c.l.s4 1966171168
    %v538 = vunpack.c.0.s8 %v537
    %v539 = vlaneseq
    %v540 = vshrl.u32 %v539, 7
    %v541 = vsub.s32 %v538, %v540
    %v542 = vrot.slane %v528, %v541
    %v543 = vcombine.high %v535, %v535
    %v544 = vcombine.high %v542, %v542
    %v546 = vunpack.c.l.s4 1966171168
    %v547 = vunpack.c.0.s8 %v546
    %v548 = vlaneseq
    %v549 = vshrl.u32 %v548, 7
    %v550 = vsub.s32 %v547, %v549
    %v551 = vrot.slane %v535, %v550
    %v553 = vunpack.c.l.s4 1966171168
    %v554 = vunpack.c.0.s8 %v553
    %v555 = vlaneseq
    %v556 = vshrl.u32 %v555, 7
    %v557 = vsub.s32 %v554, %v556
    %v558 = vrot.slane %v542, %v557
    %v560 = vunpack.c.l.s4 1966171168
    %v561 = vunpack.c.0.s8 %v560
    %v562 = vlaneseq
    %v563 = vshrl.u32 %v562, 7
    %v564 = vsub.s32 %v561, %v563
    %v565 = vrot.slane %v543, %v564
    %v567 = vunpack.c.l.s4 1966171168
    %v568 = vunpack.c.0.s8 %v567
    %v569 = vlaneseq
    %v570 = vshrl.u32 %v569, 7
    %v571 = vsub.s32 %v568, %v570
    %v572 = vrot.slane %v544, %v571
    %v573 = vcombine.high %v551, %v551
    %v574 = vcombine.high %v558, %v558
    %v575 = vcombine.high %v565, %v565
    %v576 = vcombine.high %v572, %v572
    %v975 = vunpack.c.l.b16 %v47
    %v976 = vunpack.c.l.b16 %v48
    %v977 = vunpack.c.l.b16 %v49
    %v978 = vunpack.c.l.b16 %v50
    %v979 = vunpack.c.l.b16 %v51
    %v980 = vunpack.c.l.b16 %v52
    %v981 = vunpack.c.l.b16 %v53
    %v982 = vunpack.c.l.b16 %v54
    %v983 = vunpack.c.l.b16 %v55
    %v984 = vunpack.c.l.b16 %v56
    %v985 = vunpack.c.l.b16 %v57
    %v986 = vunpack.c.l.b16 %v58
    %v987 = vunpack.c.l.b16 %v59
    %v988 = vunpack.c.l.b16 %v60
    %v989 = vunpack.c.l.b16 %v61
    %v990 = vunpack.c.l.b16 %v62
    %v991 = vunpack.c.l.b16 %v63
    %v992 = vunpack.c.l.b16 %v64
    %v993 = vunpack.c.l.b16 %v65
    %v994 = vunpack.c.l.b16 %v66
    %v995 = vunpack.c.l.b16 %v67
    %v996 = vunpack.c.l.b16 %v68
    %v997 = vunpack.c.l.b16 %v69
    %v998 = vunpack.c.l.b16 %v70
    %v999 = vunpack.c.l.b16 %v71
    %v1000 = vunpack.c.l.b16 %v72
    %v1001 = vunpack.c.l.b16 %v73
    %v1002 = vunpack.c.l.b16 %v74
    %v1003 = vunpack.c.l.b16 %v75
    %v1004 = vunpack.c.l.b16 %v76
    %v1005 = vunpack.c.l.b16 %v77
    %v1006 = vunpack.c.l.b16 %v78
    %v1007 = vunpack.c.l.b16 %v79
    %v1008 = vunpack.c.l.b16 %v80
    %v1009 = vunpack.c.l.b16 %v81
    %v1010 = vunpack.c.l.b16 %v82
    %v1011 = vunpack.c.l.b16 %v83
    %v1012 = vunpack.c.l.b16 %v84
    %v1013 = vunpack.c.l.b16 %v85
    %v1014 = vunpack.c.l.b16 %v86
    %v1015 = vunpack.c.l.b16 %v87
    %v1016 = vunpack.c.l.b16 %v88
    %v1017 = vunpack.c.l.b16 %v89
    %v1018 = vunpack.c.l.b16 %v90
    %v1019 = vunpack.c.l.b16 %v91
    %v1020 = vunpack.c.l.b16 %v92
    %v1021 = vunpack.c.l.b16 %v93
    %v1022 = vunpack.c.l.b16 %v94
    %v1023 = vunpack.c.l.b16 %v95
    %v1024 = vunpack.c.l.b16 %v96
    %v1025 = vunpack.c.l.b16 %v97
    %v1026 = vunpack.c.l.b16 %v98
    %v1027 = vunpack.c.l.b16 %v99
    %v1028 = vunpack.c.l.b16 %v100
    %v1029 = vunpack.c.l.b16 %v101
    %v1030 = vunpack.c.l.b16 %v102
    %v1031 = vunpack.c.l.b16 %v103
    %v1032 = vunpack.c.l.b16 %v104
    %v1033 = vunpack.c.l.b16 %v105
    %v1034 = vunpack.c.l.b16 %v106
    %v1035 = vunpack.c.l.b16 %v107
    %v1036 = vunpack.c.l.b16 %v108
    %v1037 = vunpack.c.l.b16 %v109
    %v1038 = vunpack.c.l.b16 %v110
    %v1039 = vunpack.c.l.b16 %v111
    %v1040 = vunpack.c.l.b16 %v112
    %v1041 = vunpack.c.l.b16 %v113
    %v1042 = vunpack.c.l.b16 %v114
    %v1043 = vunpack.c.l.b16 %v115
    %v1044 = vunpack.c.l.b16 %v116
    %v1045 = vunpack.c.l.b16 %v117
    %v1046 = vunpack.c.l.b16 %v118
    %v1047 = vunpack.c.l.b16 %v119
    %v1048 = vunpack.c.l.b16 %v120
    %v1049 = vunpack.c.l.b16 %v121
    %v1050 = vunpack.c.l.b16 %v122
    %v1051 = vunpack.c.l.b16 %v123
    %v1052 = vunpack.c.l.b16 %v124
    %v1053 = vunpack.c.l.b16 %v125
    %v1054 = vunpack.c.l.b16 %v126
    %v1055 = vunpack.c.l.b16 %v127
    %v1056 = vunpack.c.l.b16 %v128
    %v1057 = vunpack.c.l.b16 %v129
    %v1058 = vunpack.c.l.b16 %v130
    %v1059 = vunpack.c.l.b16 %v131
    %v1060 = vunpack.c.l.b16 %v132
    %v1061 = vunpack.c.l.b16 %v133
    %v1062 = vunpack.c.l.b16 %v134
    %v1063 = vunpack.c.l.b16 %v135
    %v1064 = vunpack.c.l.b16 %v136
    %v1065 = vunpack.c.l.b16 %v137
    %v1066 = vunpack.c.l.b16 %v138
    %v1067 = vunpack.c.l.b16 %v139
    %v1068 = vunpack.c.l.b16 %v140
    %v1069 = vunpack.c.l.b16 %v141
    %v1070 = vunpack.c.l.b16 %v142
    %v1071 = vunpack.c.l.b16 %v143
    %v1072 = vunpack.c.l.b16 %v144
    %v1073 = vunpack.c.l.b16 %v145
    %v1074 = vunpack.c.l.b16 %v146
    %v1075 = vunpack.c.l.b16 %v147
    %v1076 = vunpack.c.l.b16 %v148
    %v1077 = vunpack.c.l.b16 %v149
    %v1078 = vunpack.c.l.b16 %v150
    %v1079 = vunpack.c.l.b16 %v151
    %v1080 = vunpack.c.l.b16 %v152
    %v1081 = vunpack.c.l.b16 %v153
    %v1082 = vunpack.c.l.b16 %v154
    %v1083 = vunpack.c.l.b16 %v155
    %v1084 = vunpack.c.l.b16 %v156
    %v1085 = vunpack.c.l.b16 %v157
    %v1086 = vunpack.c.l.b16 %v158
    %v1087 = vunpack.c.l.b16 %v159
    %v1088 = vunpack.c.l.b16 %v160
    %v1089 = vunpack.c.l.b16 %v161
    %v1090 = vunpack.c.l.b16 %v162
    %v1091 = vunpack.c.l.b16 %v163
    %v1092 = vunpack.c.l.b16 %v164
    %v1093 = vunpack.c.l.b16 %v165
    %v1094 = vunpack.c.l.b16 %v166
    %v1095 = vunpack.c.l.b16 %v167
    %v1096 = vunpack.c.l.b16 %v168
    %v1097 = vunpack.c.l.b16 %v169
    %v1098 = vunpack.c.l.b16 %v170
    %v1099 = vunpack.c.l.b16 %v171
    %v1100 = vunpack.c.l.b16 %v172
    %v1101 = vunpack.c.l.b16 %v173
    %v1102 = vunpack.c.l.b16 %v174
    %v1103 = vunpack.c.l.b16 %v175
    %v1104 = vunpack.c.l.b16 %v176
    %v1105 = vunpack.c.l.b16 %v177
    %v1106 = vunpack.c.l.b16 %v178
    %v1107 = vunpack.c.l.b16 %v179
    %v1108 = vunpack.c.l.b16 %v180
    %v1109 = vunpack.c.l.b16 %v181
    %v1110 = vunpack.c.l.b16 %v182
    %v1111 = vunpack.c.l.b16 %v183
    %v1112 = vunpack.c.l.b16 %v184
    %v1113 = vunpack.c.l.b16 %v185
    %v1114 = vunpack.c.l.b16 %v186
    %v1115 = vunpack.c.l.b16 %v187
    %v1116 = vunpack.c.l.b16 %v188
    %v1117 = vunpack.c.l.b16 %v189
    %v1118 = vunpack.c.l.b16 %v190
    %v1119 = vunpack.c.l.b16 %v191
    %v1120 = vunpack.c.l.b16 %v192
    %v1121 = vunpack.c.l.b16 %v193
    %v1122 = vunpack.c.l.b16 %v194
    %v1123 = vunpack.c.l.b16 %v195
    %v1124 = vunpack.c.l.b16 %v196
    %v1125 = vunpack.c.l.b16 %v197
    %v1126 = vunpack.c.l.b16 %v198
    %v1127 = vunpack.c.l.b16 %v199
    %v1128 = vunpack.c.l.b16 %v200
    %v1129 = vunpack.c.l.b16 %v201
    %v1130 = vunpack.c.l.b16 %v202
    %v1131 = vunpack.c.l.b16 %v203
    %v1132 = vunpack.c.l.b16 %v204
    %v1133 = vunpack.c.l.b16 %v205
    %v1134 = vunpack.c.l.b16 %v206
    %v1135 = vunpack.c.l.b16 %v207
    %v1136 = vunpack.c.l.b16 %v208
    %v1137 = vunpack.c.l.b16 %v209
    %v1138 = vunpack.c.l.b16 %v210
    %v1139 = vunpack.c.l.b16 %v211
    %v1140 = vunpack.c.l.b16 %v212
    %v1141 = vunpack.c.l.b16 %v213
    %v1142 = vunpack.c.l.b16 %v214
    %v1143 = vunpack.c.l.b16 %v215
    %v1144 = vunpack.c.l.b16 %v216
    %v1145 = vunpack.c.l.b16 %v217
    %v1146 = vunpack.c.l.b16 %v218
    %v1147 = vunpack.c.l.b16 %v219
    %v1148 = vunpack.c.l.b16 %v220
    %v1149 = vunpack.c.l.b16 %v221
    %v1150 = vunpack.c.l.b16 %v222
    %v1151 = vunpack.c.l.b16 %v223
    %v1152 = vunpack.c.l.b16 %v224
    %v1153 = vunpack.c.l.b16 %v225
    %v1154 = vunpack.c.l.b16 %v226
    %v1155 = vunpack.c.l.b16 %v227
    %v1156 = vunpack.c.l.b16 %v228
    %v1157 = vunpack.c.l.b16 %v229
    %v1158 = vunpack.c.l.b16 %v230
    %v1159 = vunpack.c.l.b16 %v231
    %v1160 = vunpack.c.l.b16 %v232
    %v1161 = vunpack.c.l.b16 %v233
    %v1162 = vunpack.c.l.b16 %v234
    %v1163 = vunpack.c.l.b16 %v235
    %v1164 = vunpack.c.l.b16 %v236
    %v1165 = vunpack.c.l.b16 %v237
    %v1166 = vunpack.c.l.b16 %v238
    %v1167 = vunpack.c.l.b16 %v239
    %v1168 = vunpack.c.l.b16 %v240
    %v1169 = vunpack.c.l.b16 %v241
    %v1170 = vunpack.c.l.b16 %v242
    %v1171 = vunpack.c.l.b16 %v243
    %v1172 = vunpack.c.l.b16 %v244
    %v1173 = vunpack.c.l.b16 %v245
    %v1174 = vunpack.c.l.b16 %v246
    %v1175 = vunpack.c.l.b16 %v247
    %v1176 = vunpack.c.l.b16 %v248
    %v1177 = vunpack.c.l.b16 %v249
    %v1178 = vunpack.c.l.b16 %v250
    %v1179 = vunpack.c.l.b16 %v251
    %v1180 = vunpack.c.l.b16 %v252
    %v1181 = vunpack.c.l.b16 %v253
    %v1182 = vunpack.c.l.b16 %v254
    %v1183 = vunpack.c.l.b16 %v255
    %v1184 = vunpack.c.l.b16 %v256
    %v1185 = vunpack.c.l.b16 %v257
    %v1186 = vunpack.c.l.b16 %v258
    %v1187 = vunpack.c.l.b16 %v259
    %v1188 = vunpack.c.l.b16 %v260
    %v1189 = vunpack.c.l.b16 %v261
    %v1190 = vunpack.c.l.b16 %v262
    %v1191 = vunpack.c.l.b16 %v263
    %v1192 = vunpack.c.l.b16 %v264
    %v1193 = vunpack.c.l.b16 %v265
    %v1194 = vunpack.c.l.b16 %v266
    %v1195 = vunpack.c.l.b16 %v267
    %v1196 = vunpack.c.l.b16 %v268
    %v1197 = vunpack.c.l.b16 %v269
    %v1198 = vunpack.c.l.b16 %v270
    %v1199 = vunpack.c.l.b16 %v271
    %v1200 = vunpack.c.l.b16 %v272
    %v1201 = vunpack.c.l.b16 %v273
    %v1202 = vunpack.c.l.b16 %v274
    %v1203 = vunpack.c.l.b16 %v275
    %v1204 = vunpack.c.l.b16 %v276
    %v1205 = vunpack.c.l.b16 %v277
    %v1206 = vunpack.c.l.b16 %v278
    %v1207 = vunpack.c.l.b16 %v279
    %v1208 = vunpack.c.l.b16 %v280
    %v1209 = vunpack.c.l.b16 %v281
    %v1210 = vunpack.c.l.b16 %v282
    %v1211 = vunpack.c.l.b16 %v283
    %v1212 = vunpack.c.l.b16 %v284
    %v1213 = vunpack.c.l.b16 %v285
    %v1214 = vunpack.c.l.b16 %v286
    %v1215 = vunpack.c.l.b16 %v287
    %v1216 = vunpack.c.l.b16 %v288
    %v1217 = vunpack.c.l.b16 %v289
    %v1218 = vunpack.c.l.b16 %v290
    %v1219 = vunpack.c.l.b16 %v291
    %v1220 = vunpack.c.l.b16 %v292
    %v1221 = vunpack.c.l.b16 %v293
    %v1222 = vunpack.c.l.b16 %v294
    %v1223 = vunpack.c.l.b16 %v295
    %v1224 = vunpack.c.l.b16 %v296
    %v1225 = vunpack.c.l.b16 %v297
    %v1226 = vunpack.c.l.b16 %v298
    %v1227 = vunpack.c.l.b16 %v299
    %v1228 = vunpack.c.l.b16 %v300
    %v1229 = vunpack.c.l.b16 %v301
    %v1230 = vunpack.c.l.b16 %v302
    %v1231 = vunpack.c.l.b16 %v303
    %v1232 = vunpack.c.l.b16 %v304
    %v1233 = vunpack.c.l.b16 %v305
    %v1234 = vunpack.c.l.b16 %v306
    %v1235 = vunpack.c.l.b16 %v307
    %v1236 = vunpack.c.l.b16 %v308
    %v1237 = vunpack.c.l.b16 %v309
    %v1238 = vunpack.c.l.b16 %v310
    %v1239 = vunpack.c.l.b16 %v311
    %v1240 = vunpack.c.l.b16 %v312
    %v1241 = vunpack.c.l.b16 %v313
    %v1242 = vunpack.c.l.b16 %v314
    %v1243 = vunpack.c.l.b16 %v315
    %v1244 = vunpack.c.l.b16 %v316
    %v1245 = vunpack.c.l.b16 %v317
    %v1246 = vunpack.c.l.b16 %v318
    %v1247 = vunpack.c.l.b16 %v319
    %v1248 = vunpack.c.l.b16 %v320
    %v1249 = vunpack.c.l.b16 %v321
    %v1250 = vunpack.c.l.b16 %v322
    %v1251 = vunpack.c.l.b16 %v323
    %v1252 = vunpack.c.l.b16 %v324
    %v1253 = vunpack.c.l.b16 %v325
    %v1254 = vunpack.c.l.b16 %v326
    %v1255 = vunpack.c.l.b16 %v327
    %v1256 = vunpack.c.l.b16 %v328
    %v1257 = vunpack.c.l.b16 %v329
    %v1258 = vunpack.c.l.b16 %v330
    %v1259 = vunpack.c.l.b16 %v331
    %v1260 = vunpack.c.l.b16 %v332
    %v1261 = vunpack.c.l.b16 %v333
    %v1262 = vunpack.c.l.b16 %v334
    %v1263 = vunpack.c.l.b16 %v335
    %v1264 = vunpack.c.l.b16 %v336
    %v1265 = vunpack.c.l.b16 %v337
    %v1266 = vunpack.c.l.b16 %v338
    %v1267 = vunpack.c.l.b16 %v339
    %v1268 = vunpack.c.l.b16 %v340
    %v1269 = vunpack.c.l.b16 %v341
    %v1270 = vunpack.c.l.b16 %v342
    %v1271 = vunpack.c.l.b16 %v343
    %v1272 = vunpack.c.l.b16 %v344
    %v1273 = vunpack.c.l.b16 %v345
    %v1274 = vunpack.c.l.b16 %v346
    %v1275 = vunpack.c.l.b16 %v347
    %v1276 = vunpack.c.l.b16 %v348
    %v1277 = vunpack.c.l.b16 %v349
    %v1278 = vunpack.c.l.b16 %v350
    %v1279 = vunpack.c.l.b16 %v351
    %v1280 = vunpack.c.l.b16 %v352
    %v1281 = vunpack.c.l.b16 %v353
    %v1282 = vunpack.c.l.b16 %v354
    %v1283 = vunpack.c.l.b16 %v355
    %v1284 = vunpack.c.l.b16 %v356
    %v1285 = vunpack.c.l.b16 %v357
    %v1286 = vunpack.c.l.b16 %v358
    %v1287 = vunpack.c.l.b16 %v359
    %v1288 = vunpack.c.l.b16 %v360
    %v1289 = vunpack.c.l.b16 %v361
    %v1290 = vunpack.c.l.b16 %v362
    %v1291 = vunpack.c.l.b16 %v363
    %v1292 = vunpack.c.l.b16 %v364
    %v1293 = vunpack.c.l.b16 %v365
    %v1294 = vunpack.c.l.b16 %v366
    %v1295 = vunpack.c.l.b16 %v367
    %v1296 = vunpack.c.l.b16 %v368
    %v1297 = vunpack.c.l.b16 %v369
    %v1298 = vunpack.c.l.b16 %v370
    %v1299 = vunpack.c.l.b16 %v371
    %v1300 = vunpack.c.l.b16 %v372
    %v1301 = vunpack.c.l.b16 %v373
    %v1302 = vunpack.c.l.b16 %v374
    %v1303 = vunpack.c.l.b16 %v375
    %v1304 = vunpack.c.l.b16 %v376
    %v1305 = vunpack.c.l.b16 %v377
    %v1306 = vunpack.c.l.b16 %v378
    %v1307 = vunpack.c.l.b16 %v379
    %v1308 = vunpack.c.l.b16 %v380
    %v1309 = vunpack.c.l.b16 %v381
    %v1310 = vunpack.c.l.b16 %v382
    %v1311 = vunpack.c.l.b16 %v383
    %v1312 = vunpack.c.l.b16 %v384
    %v1313 = vunpack.c.l.b16 %v385
    %v1314 = vunpack.c.l.b16 %v386
    %v1315 = vunpack.c.l.b16 %v387
    %v1316 = vunpack.c.l.b16 %v388
    %v1317 = vunpack.c.l.b16 %v389
    %v1318 = vunpack.c.l.b16 %v390
    %v1319 = vunpack.c.l.b16 %v391
    %v1320 = vunpack.c.l.b16 %v392
    %v1321 = vunpack.c.l.b16 %v393
    %v1322 = vunpack.c.l.b16 %v394
    %v1323 = vunpack.c.l.b16 %v395
    %v1324 = vunpack.c.l.b16 %v396
    %v1325 = vunpack.c.l.b16 %v397
    %v1326 = vunpack.c.l.b16 %v398
    %v1327 = vunpack.c.l.b16 %v399
    %v1328 = vunpack.c.l.b16 %v400
    %v1329 = vunpack.c.l.b16 %v401
    %v1330 = vunpack.c.l.b16 %v402
    %v1331 = vunpack.c.l.b16 %v403
    %v1332 = vunpack.c.l.b16 %v404
    %v1333 = vunpack.c.l.b16 %v405
    %v1334 = vunpack.c.l.b16 %v406
    %v1335 = vunpack.c.l.b16 %v407
    %v1336 = vunpack.c.l.b16 %v408
    %v1337 = vunpack.c.l.b16 %v409
    %v1338 = vunpack.c.l.b16 %v410
    %v1339 = vunpack.c.l.b16 %v411
    %v1340 = vunpack.c.l.b16 %v412
    %v1341 = vunpack.c.l.b16 %v413
    %v1342 = vunpack.c.l.b16 %v414
    %v1343 = vunpack.c.l.b16 %v415
    %v1344 = vunpack.c.l.b16 %v416
    %v1345 = vunpack.c.l.b16 %v417
    %v1346 = vunpack.c.l.b16 %v418
    %v1347 = vunpack.c.l.b16 %v419
    %v1348 = vunpack.c.l.b16 %v420
    %v1349 = vunpack.c.l.b16 %v421
    %v1350 = vpack.c.b16 %v976, %v975
    %v1351 = vpack.c.b16 %v978, %v977
    %v1352 = vpack.c.b16 %v980, %v979
    %v1353 = vpack.c.b16 %v982, %v981
    %v1354 = vpack.c.b16 %v984, %v983
    %v1355 = vpack.c.b16 %v986, %v985
    %v1356 = vpack.c.b16 %v988, %v987
    %v1357 = vpack.c.b16 %v990, %v989
    %v1358 = vpack.c.b16 %v992, %v991
    %v1359 = vpack.c.b16 %v994, %v993
    %v1360 = vpack.c.b16 %v996, %v995
    %v1361 = vpack.c.b16 %v998, %v997
    %v1362 = vpack.c.b16 %v1000, %v999
    %v1363 = vpack.c.b16 %v1002, %v1001
    %v1364 = vpack.c.b16 %v1004, %v1003
    %v1365 = vpack.c.b16 %v1006, %v1005
    %v1366 = vpack.c.b16 %v1008, %v1007
    %v1367 = vpack.c.b16 %v1010, %v1009
    %v1368 = vpack.c.b16 %v1012, %v1011
    %v1369 = vpack.c.b16 %v1014, %v1013
    %v1370 = vpack.c.b16 %v1016, %v1015
    %v1371 = vpack.c.b16 %v1018, %v1017
    %v1372 = vpack.c.b16 %v1020, %v1019
    %v1373 = vpack.c.b16 %v1022, %v1021
    %v1374 = vpack.c.b16 %v1024, %v1023
    %v1375 = vpack.c.b16 %v1026, %v1025
    %v1376 = vpack.c.b16 %v1028, %v1027
    %v1377 = vpack.c.b16 %v1030, %v1029
    %v1378 = vpack.c.b16 %v1032, %v1031
    %v1379 = vpack.c.b16 %v1034, %v1033
    %v1380 = vpack.c.b16 %v1036, %v1035
    %v1381 = vpack.c.b16 %v1038, %v1037
    %v1382 = vpack.c.b16 %v1040, %v1039
    %v1383 = vpack.c.b16 %v1042, %v1041
    %v1384 = vpack.c.b16 %v1044, %v1043
    %v1385 = vpack.c.b16 %v1046, %v1045
    %v1386 = vpack.c.b16 %v1048, %v1047
    %v1387 = vpack.c.b16 %v1050, %v1049
    %v1388 = vpack.c.b16 %v1052, %v1051
    %v1389 = vpack.c.b16 %v1054, %v1053
    %v1390 = vpack.c.b16 %v1056, %v1055
    %v1391 = vpack.c.b16 %v1058, %v1057
    %v1392 = vpack.c.b16 %v1060, %v1059
    %v1393 = vpack.c.b16 %v1062, %v1061
    %v1394 = vpack.c.b16 %v1064, %v1063
    %v1395 = vpack.c.b16 %v1066, %v1065
    %v1396 = vpack.c.b16 %v1068, %v1067
    %v1397 = vpack.c.b16 %v1070, %v1069
    %v1398 = vpack.c.b16 %v1072, %v1071
    %v1399 = vpack.c.b16 %v1074, %v1073
    %v1400 = vpack.c.b16 %v1076, %v1075
    %v1401 = vpack.c.b16 %v1078, %v1077
    %v1402 = vpack.c.b16 %v1080, %v1079
    %v1403 = vpack.c.b16 %v1082, %v1081
    %v1404 = vpack.c.b16 %v1084, %v1083
    %v1405 = vpack.c.b16 %v1086, %v1085
    %v1406 = vpack.c.b16 %v1088, %v1087
    %v1407 = vpack.c.b16 %v1090, %v1089
    %v1408 = vpack.c.b16 %v1092, %v1091
    %v1409 = vpack.c.b16 %v1094, %v1093
    %v1410 = vpack.c.b16 %v1096, %v1095
    %v1411 = vpack.c.b16 %v1098, %v1097
    %v1412 = vpack.c.b16 %v1100, %v1099
    %v1413 = vpack.c.b16 %v1102, %v1101
    %v1414 = vpack.c.b16 %v1104, %v1103
    %v1415 = vpack.c.b16 %v1106, %v1105
    %v1416 = vpack.c.b16 %v1108, %v1107
    %v1417 = vpack.c.b16 %v1110, %v1109
    %v1418 = vpack.c.b16 %v1112, %v1111
    %v1419 = vpack.c.b16 %v1114, %v1113
    %v1420 = vpack.c.b16 %v1116, %v1115
    %v1421 = vpack.c.b16 %v1118, %v1117
    %v1422 = vpack.c.b16 %v1120, %v1119
    %v1423 = vpack.c.b16 %v1122, %v1121
    %v1424 = vpack.c.b16 %v1124, %v1123
    %v1425 = vpack.c.b16 %v1126, %v1125
    %v1426 = vpack.c.b16 %v1128, %v1127
    %v1427 = vpack.c.b16 %v1130, %v1129
    %v1428 = vpack.c.b16 %v1132, %v1131
    %v1429 = vpack.c.b16 %v1134, %v1133
    %v1430 = vpack.c.b16 %v1136, %v1135
    %v1431 = vpack.c.b16 %v1138, %v1137
    %v1432 = vpack.c.b16 %v1140, %v1139
    %v1433 = vpack.c.b16 %v1142, %v1141
    %v1434 = vpack.c.b16 %v1144, %v1143
    %v1435 = vpack.c.b16 %v1146, %v1145
    %v1436 = vpack.c.b16 %v1148, %v1147
    %v1437 = vpack.c.b16 %v1150, %v1149
    %v1438 = vpack.c.b16 %v1152, %v1151
    %v1439 = vpack.c.b16 %v1154, %v1153
    %v1440 = vpack.c.b16 %v1156, %v1155
    %v1441 = vpack.c.b16 %v1158, %v1157
    %v1442 = vpack.c.b16 %v1160, %v1159
    %v1443 = vpack.c.b16 %v1162, %v1161
    %v1444 = vpack.c.b16 %v1164, %v1163
    %v1445 = vpack.c.b16 %v1166, %v1165
    %v1446 = vpack.c.b16 %v1168, %v1167
    %v1447 = vpack.c.b16 %v1170, %v1169
    %v1448 = vpack.c.b16 %v1172, %v1171
    %v1449 = vpack.c.b16 %v1174, %v1173
    %v1450 = vpack.c.b16 %v1176, %v1175
    %v1451 = vpack.c.b16 %v1178, %v1177
    %v1452 = vpack.c.b16 %v1180, %v1179
    %v1453 = vpack.c.b16 %v1182, %v1181
    %v1454 = vpack.c.b16 %v1184, %v1183
    %v1455 = vpack.c.b16 %v1186, %v1185
    %v1456 = vpack.c.b16 %v1188, %v1187
    %v1457 = vpack.c.b16 %v1190, %v1189
    %v1458 = vpack.c.b16 %v1192, %v1191
    %v1459 = vpack.c.b16 %v1194, %v1193
    %v1460 = vpack.c.b16 %v1196, %v1195
    %v1461 = vpack.c.b16 %v1198, %v1197
    %v1462 = vpack.c.b16 %v1200, %v1199
    %v1463 = vpack.c.b16 %v1202, %v1201
    %v1464 = vpack.c.b16 %v1204, %v1203
    %v1465 = vpack.c.b16 %v1206, %v1205
    %v1466 = vpack.c.b16 %v1208, %v1207
    %v1467 = vpack.c.b16 %v1210, %v1209
    %v1468 = vpack.c.b16 %v1212, %v1211
    %v1469 = vpack.c.b16 %v1214, %v1213
    %v1470 = vpack.c.b16 %v1216, %v1215
    %v1471 = vpack.c.b16 %v1218, %v1217
    %v1472 = vpack.c.b16 %v1220, %v1219
    %v1473 = vpack.c.b16 %v1222, %v1221
    %v1474 = vpack.c.b16 %v1224, %v1223
    %v1475 = vpack.c.b16 %v1226, %v1225
    %v1476 = vpack.c.b16 %v1228, %v1227
    %v1477 = vpack.c.b16 %v1230, %v1229
    %v1478 = vpack.c.b16 %v1232, %v1231
    %v1479 = vpack.c.b16 %v1234, %v1233
    %v1480 = vpack.c.b16 %v1236, %v1235
    %v1481 = vpack.c.b16 %v1238, %v1237
    %v1482 = vpack.c.b16 %v1240, %v1239
    %v1483 = vpack.c.b16 %v1242, %v1241
    %v1484 = vpack.c.b16 %v1244, %v1243
    %v1485 = vpack.c.b16 %v1246, %v1245
    %v1486 = vpack.c.b16 %v1248, %v1247
    %v1487 = vpack.c.b16 %v1250, %v1249
    %v1488 = vpack.c.b16 %v1252, %v1251
    %v1489 = vpack.c.b16 %v1254, %v1253
    %v1490 = vpack.c.b16 %v1256, %v1255
    %v1491 = vpack.c.b16 %v1258, %v1257
    %v1492 = vpack.c.b16 %v1260, %v1259
    %v1493 = vpack.c.b16 %v1262, %v1261
    %v1494 = vpack.c.b16 %v1264, %v1263
    %v1495 = vpack.c.b16 %v1266, %v1265
    %v1496 = vpack.c.b16 %v1268, %v1267
    %v1497 = vpack.c.b16 %v1270, %v1269
    %v1498 = vpack.c.b16 %v1272, %v1271
    %v1499 = vpack.c.b16 %v1274, %v1273
    %v1500 = vpack.c.b16 %v1276, %v1275
    %v1501 = vpack.c.b16 %v1278, %v1277
    %v1502 = vpack.c.b16 %v1280, %v1279
    %v1503 = vpack.c.b16 %v1282, %v1281
    %v1504 = vpack.c.b16 %v1284, %v1283
    %v1505 = vpack.c.b16 %v1286, %v1285
    %v1506 = vpack.c.b16 %v1288, %v1287
    %v1507 = vpack.c.b16 %v1290, %v1289
    %v1508 = vpack.c.b16 %v1292, %v1291
    %v1509 = vpack.c.b16 %v1294, %v1293
    %v1510 = vpack.c.b16 %v1296, %v1295
    %v1511 = vpack.c.b16 %v1298, %v1297
    %v1512 = vpack.c.b16 %v1300, %v1299
    %v1513 = vpack.c.b16 %v1302, %v1301
    %v1514 = vpack.c.b16 %v1304, %v1303
    %v1515 = vpack.c.b16 %v1306, %v1305
    %v1516 = vpack.c.b16 %v1308, %v1307
    %v1517 = vpack.c.b16 %v1310, %v1309
    %v1518 = vpack.c.b16 %v1312, %v1311
    %v1519 = vpack.c.b16 %v1314, %v1313
    %v1520 = vpack.c.b16 %v1316, %v1315
    %v1521 = vpack.c.b16 %v1318, %v1317
    %v1522 = vpack.c.b16 %v1320, %v1319
    %v1523 = vpack.c.b16 %v1322, %v1321
    %v1524 = vpack.c.b16 %v1324, %v1323
    %v1525 = vpack.c.b16 %v1326, %v1325
    %v1526 = vpack.c.b16 %v1328, %v1327
    %v1527 = vpack.c.b16 %v1330, %v1329
    %v1528 = vpack.c.b16 %v1332, %v1331
    %v1529 = vpack.c.b16 %v1334, %v1333
    %v1530 = vpack.c.b16 %v1336, %v1335
    %v1531 = vpack.c.b16 %v1338, %v1337
    %v1532 = vpack.c.b16 %v1340, %v1339
    %v1533 = vpack.c.b16 %v1342, %v1341
    %v1534 = vpack.c.b16 %v1344, %v1343
    %v1535 = vpack.c.b16 %v1346, %v1345
    %v1536 = vpack.c.b16 %v1348, %v1347
    %v1537 = vpack.c.b16 %v1349, %v1349
    %vm1725 = vcmask 457728
    %v1727 = vsel %vm1725, %v576, 0
    %vm1729 = vcmask 1043456
    %v1731 = vsel %vm1729, %v1537, 0
    %1733 = vmatprep.subr.bf16.mxu0 0
    %1734 = vmatpush1.bf16.msra.mxu0 %v1350
    %1735 = vmatprep.subr.bf16.mxu0 0
    %1736 = vmatpush1.bf16.msra.mxu0 %v1351
    %1737 = vmatprep.subr.bf16.mxu0 0
    %1738 = vmatpush1.bf16.msra.mxu0 %v1352
    %1739 = vmatprep.subr.bf16.mxu0 0
    %1740 = vmatpush1.bf16.msra.mxu0 %v1353
    %1741 = vmatprep.subr.bf16.mxu0 0
    %1742 = vmatpush1.bf16.msra.mxu0 %v1354
    %1743 = vmatprep.subr.bf16.mxu0 0
    %1744 = vmatpush1.bf16.msra.mxu0 %v1355
    %1745 = vmatprep.subr.bf16.mxu0 0
    %1746 = vmatpush1.bf16.msra.mxu0 %v1356
    %1747 = vmatprep.subr.bf16.mxu0 0
    %1748 = vmatpush1.bf16.msra.mxu0 %v1357
    %1749 = vmatprep.subr.bf16.mxu0 0
    %1750 = vmatpush1.bf16.msra.mxu0 %v1358
    %1751 = vmatprep.subr.bf16.mxu0 0
    %1752 = vmatpush1.bf16.msra.mxu0 %v1359
    %1753 = vmatprep.subr.bf16.mxu0 0
    %1754 = vmatpush1.bf16.msra.mxu0 %v1360
    %1755 = vmatprep.subr.bf16.mxu0 0
    %1756 = vmatpush1.bf16.msra.mxu0 %v1361
    %1757 = vmatprep.subr.bf16.mxu0 0
    %1758 = vmatpush1.bf16.msra.mxu0 %v1362
    %1759 = vmatprep.subr.bf16.mxu0 0
    %1760 = vmatpush1.bf16.msra.mxu0 %v1363
    %1761 = vmatprep.subr.bf16.mxu0 0
    %1762 = vmatpush1.bf16.msra.mxu0 %v1364
    %1763 = vmatprep.subr.bf16.mxu0 0
    %1764 = vmatpush1.bf16.msra.mxu0 %v1365
    %1765 = vmatprep.mubr.bf16.mxu0 %v467
    %1766 = vmatmul.mubr.bf16.gmra.mrb[0].mxu0 %v453
    %v1767 = vpop.f32.mrb[0].mxu0
    %v1768 = vadd.f32 %v426, %v1767
    %v1769 = vpop.f32.mrb[0].mxu0
    %v1770 = vpop.f32.mrb[0].mxu0
    %v1771 = vpop.f32.mrb[0].mxu0
    %1772 = vdwg.mxu0
    %1773 = vmatprep.subr.bf16.mxu0 0
    %1774 = vmatpush1.bf16.msra.mxu0 %v1366
    %1775 = vmatprep.subr.bf16.mxu0 0
    %1776 = vmatpush1.bf16.msra.mxu0 %v1367
    %1777 = vmatprep.subr.bf16.mxu0 0
    %1778 = vmatpush1.bf16.msra.mxu0 %v1368
    %1779 = vmatprep.subr.bf16.mxu0 0
    %1780 = vmatpush1.bf16.msra.mxu0 %v1369
    %1781 = vmatprep.subr.bf16.mxu0 0
    %1782 = vmatpush1.bf16.msra.mxu0 %v1370
    %1783 = vmatprep.subr.bf16.mxu0 0
    %1784 = vmatpush1.bf16.msra.mxu0 %v1371
    %1785 = vmatprep.subr.bf16.mxu0 0
    %1786 = vmatpush1.bf16.msra.mxu0 %v1372
    %1787 = vmatprep.subr.bf16.mxu0 0
    %1788 = vmatpush1.bf16.msra.mxu0 %v1373
    %1789 = vmatprep.subr.bf16.mxu0 0
    %1790 = vmatpush1.bf16.msra.mxu0 %v1374
    %1791 = vmatprep.subr.bf16.mxu0 0
    %1792 = vmatpush1.bf16.msra.mxu0 %v1375
    %1793 = vmatprep.subr.bf16.mxu0 0
    %1794 = vmatpush1.bf16.msra.mxu0 %v1376
    %1795 = vmatprep.subr.bf16.mxu0 0
    %1796 = vmatpush1.bf16.msra.mxu0 %v1377
    %1797 = vmatprep.subr.bf16.mxu0 0
    %1798 = vmatpush1.bf16.msra.mxu0 %v1378
    %1799 = vmatprep.subr.bf16.mxu0 0
    %1800 = vmatpush1.bf16.msra.mxu0 %v1379
    %1801 = vmatprep.subr.bf16.mxu0 0
    %1802 = vmatpush1.bf16.msra.mxu0 %v1380
    %1803 = vmatprep.subr.bf16.mxu0 0
    %1804 = vmatpush1.bf16.msra.mxu0 %v1381
    %1805 = vmatprep.mubr.bf16.mxu0 %v477
    %1806 = vmatmul.mubr.bf16.gmra.mrb[0].mxu0 %v475
    %v1807 = vpop.f32.mrb[0].mxu0
    %v1808 = vadd.f32 %v1768, %v1807
    %v1809 = vpop.f32.mrb[0].mxu0
    %v1810 = vpop.f32.mrb[0].mxu0
    %v1811 = vpop.f32.mrb[0].mxu0
    %1812 = vdwg.mxu0
    %1813 = vmatprep.subr.bf16.mxu0 0
    %1814 = vmatpush1.bf16.msra.mxu0 %v1382
    %1815 = vmatprep.subr.bf16.mxu0 0
    %1816 = vmatpush1.bf16.msra.mxu0 %v1383
    %1817 = vmatprep.subr.bf16.mxu0 0
    %1818 = vmatpush1.bf16.msra.mxu0 %v1384
    %1819 = vmatprep.subr.bf16.mxu0 0
    %1820 = vmatpush1.bf16.msra.mxu0 %v1385
    %1821 = vmatprep.subr.bf16.mxu0 0
    %1822 = vmatpush1.bf16.msra.mxu0 %v1386
    %1823 = vmatprep.subr.bf16.mxu0 0
    %1824 = vmatpush1.bf16.msra.mxu0 %v1387
    %1825 = vmatprep.subr.bf16.mxu0 0
    %1826 = vmatpush1.bf16.msra.mxu0 %v1388
    %1827 = vmatprep.subr.bf16.mxu0 0
    %1828 = vmatpush1.bf16.msra.mxu0 %v1389
    %1829 = vmatprep.subr.bf16.mxu0 0
    %1830 = vmatpush1.bf16.msra.mxu0 %v1390
    %1831 = vmatprep.subr.bf16.mxu0 0
    %1832 = vmatpush1.bf16.msra.mxu0 %v1391
    %1833 = vmatprep.subr.bf16.mxu0 0
    %1834 = vmatpush1.bf16.msra.mxu0 %v1392
    %1835 = vmatprep.subr.bf16.mxu0 0
    %1836 = vmatpush1.bf16.msra.mxu0 %v1393
    %1837 = vmatprep.subr.bf16.mxu0 0
    %1838 = vmatpush1.bf16.msra.mxu0 %v1394
    %1839 = vmatprep.subr.bf16.mxu0 0
    %1840 = vmatpush1.bf16.msra.mxu0 %v1395
    %1841 = vmatprep.subr.bf16.mxu0 0
    %1842 = vmatpush1.bf16.msra.mxu0 %v1396
    %1843 = vmatprep.subr.bf16.mxu0 0
    %1844 = vmatpush1.bf16.msra.mxu0 %v1397
    %1845 = vmatprep.mubr.bf16.mxu0 %v474
    %1846 = vmatmul.mubr.bf16.gmra.mrb[0].mxu0 %v460
    %v1847 = vpop.f32.mrb[0].mxu0
    %v1848 = vadd.f32 %v1808, %v1847
    %v1849 = vpop.f32.mrb[0].mxu0
    %v1850 = vpop.f32.mrb[0].mxu0
    %v1851 = vpop.f32.mrb[0].mxu0
    %1852 = vdwg.mxu0
    %1853 = vmatprep.subr.bf16.mxu0 0
    %1854 = vmatpush1.bf16.msra.mxu0 %v1398
    %1855 = vmatprep.subr.bf16.mxu0 0
    %1856 = vmatpush1.bf16.msra.mxu0 %v1399
    %1857 = vmatprep.subr.bf16.mxu0 0
    %1858 = vmatpush1.bf16.msra.mxu0 %v1400
    %1859 = vmatprep.subr.bf16.mxu0 0
    %1860 = vmatpush1.bf16.msra.mxu0 %v1401
    %1861 = vmatprep.subr.bf16.mxu0 0
    %1862 = vmatpush1.bf16.msra.mxu0 %v1402
    %1863 = vmatprep.subr.bf16.mxu0 0
    %1864 = vmatpush1.bf16.msra.mxu0 %v1403
    %1865 = vmatprep.subr.bf16.mxu0 0
    %1866 = vmatpush1.bf16.msra.mxu0 %v1404
    %1867 = vmatprep.subr.bf16.mxu0 0
    %1868 = vmatpush1.bf16.msra.mxu0 %v1405
    %1869 = vmatprep.subr.bf16.mxu0 0
    %1870 = vmatpush1.bf16.msra.mxu0 %v1406
    %1871 = vmatprep.subr.bf16.mxu0 0
    %1872 = vmatpush1.bf16.msra.mxu0 %v1407
    %1873 = vmatprep.subr.bf16.mxu0 0
    %1874 = vmatpush1.bf16.msra.mxu0 %v1408
    %1875 = vmatprep.subr.bf16.mxu0 0
    %1876 = vmatpush1.bf16.msra.mxu0 %v1409
    %1877 = vmatprep.subr.bf16.mxu0 0
    %1878 = vmatpush1.bf16.msra.mxu0 %v1410
    %1879 = vmatprep.subr.bf16.mxu0 0
    %1880 = vmatpush1.bf16.msra.mxu0 %v1411
    %1881 = vmatprep.subr.bf16.mxu0 0
    %1882 = vmatpush1.bf16.msra.mxu0 %v1412
    %1883 = vmatprep.subr.bf16.mxu0 0
    %1884 = vmatpush1.bf16.msra.mxu0 %v1413
    %1885 = vmatprep.mubr.bf16.mxu0 %v478
    %1886 = vmatmul.mubr.bf16.gmra.mrb[0].mxu0 %v476
    %v1887 = vpop.f32.mrb[0].mxu0
    %v1888 = vadd.f32 %v1848, %v1887
    %v1889 = vpop.f32.mrb[0].mxu0
    %v1890 = vpop.f32.mrb[0].mxu0
    %v1891 = vpop.f32.mrb[0].mxu0
    %1892 = vdwg.mxu0
    %1893 = vmatprep.subr.bf16.mxu0 0
    %1894 = vmatpush1.bf16.msra.mxu0 %v1414
    %1895 = vmatprep.subr.bf16.mxu0 0
    %1896 = vmatpush1.bf16.msra.mxu0 %v1415
    %1897 = vmatprep.subr.bf16.mxu0 0
    %1898 = vmatpush1.bf16.msra.mxu0 %v1416
    %1899 = vmatprep.subr.bf16.mxu0 0
    %1900 = vmatpush1.bf16.msra.mxu0 %v1417
    %1901 = vmatprep.subr.bf16.mxu0 0
    %1902 = vmatpush1.bf16.msra.mxu0 %v1418
    %1903 = vmatprep.subr.bf16.mxu0 0
    %1904 = vmatpush1.bf16.msra.mxu0 %v1419
    %1905 = vmatprep.subr.bf16.mxu0 0
    %1906 = vmatpush1.bf16.msra.mxu0 %v1420
    %1907 = vmatprep.subr.bf16.mxu0 0
    %1908 = vmatpush1.bf16.msra.mxu0 %v1421
    %1909 = vmatprep.subr.bf16.mxu0 0
    %1910 = vmatpush1.bf16.msra.mxu0 %v1422
    %1911 = vmatprep.subr.bf16.mxu0 0
    %1912 = vmatpush1.bf16.msra.mxu0 %v1423
    %1913 = vmatprep.subr.bf16.mxu0 0
    %1914 = vmatpush1.bf16.msra.mxu0 %v1424
    %1915 = vmatprep.subr.bf16.mxu0 0
    %1916 = vmatpush1.bf16.msra.mxu0 %v1425
    %1917 = vmatprep.subr.bf16.mxu0 0
    %1918 = vmatpush1.bf16.msra.mxu0 %v1426
    %1919 = vmatprep.subr.bf16.mxu0 0
    %1920 = vmatpush1.bf16.msra.mxu0 %v1427
    %1921 = vmatprep.subr.bf16.mxu0 0
    %1922 = vmatpush1.bf16.msra.mxu0 %v1428
    %1923 = vmatprep.subr.bf16.mxu0 0
    %1924 = vmatpush1.bf16.msra.mxu0 %v1429
    %1925 = vmatprep.mubr.bf16.mxu0 %v516
    %1926 = vmatmul.mubr.bf16.gmra.mrb[0].mxu0 %v502
    %v1927 = vpop.f32.mrb[0].mxu0
    %v1928 = vadd.f32 %v1888, %v1927
    %v1929 = vpop.f32.mrb[0].mxu0
    %v1930 = vpop.f32.mrb[0].mxu0
    %v1931 = vpop.f32.mrb[0].mxu0
    %1932 = vdwg.mxu0
    %1933 = vmatprep.subr.bf16.mxu0 0
    %1934 = vmatpush1.bf16.msra.mxu0 %v1430
    %1935 = vmatprep.subr.bf16.mxu0 0
    %1936 = vmatpush1.bf16.msra.mxu0 %v1431
    %1937 = vmatprep.subr.bf16.mxu0 0
    %1938 = vmatpush1.bf16.msra.mxu0 %v1432
    %1939 = vmatprep.subr.bf16.mxu0 0
    %1940 = vmatpush1.bf16.msra.mxu0 %v1433
    %1941 = vmatprep.subr.bf16.mxu0 0
    %1942 = vmatpush1.bf16.msra.mxu0 %v1434
    %1943 = vmatprep.subr.bf16.mxu0 0
    %1944 = vmatpush1.bf16.msra.mxu0 %v1435
    %1945 = vmatprep.subr.bf16.mxu0 0
    %1946 = vmatpush1.bf16.msra.mxu0 %v1436
    %1947 = vmatprep.subr.bf16.mxu0 0
    %1948 = vmatpush1.bf16.msra.mxu0 %v1437
    %1949 = vmatprep.subr.bf16.mxu0 0
    %1950 = vmatpush1.bf16.msra.mxu0 %v1438
    %1951 = vmatprep.subr.bf16.mxu0 0
    %1952 = vmatpush1.bf16.msra.mxu0 %v1439
    %1953 = vmatprep.subr.bf16.mxu0 0
    %1954 = vmatpush1.bf16.msra.mxu0 %v1440
    %1955 = vmatprep.subr.bf16.mxu0 0
    %1956 = vmatpush1.bf16.msra.mxu0 %v1441
    %1957 = vmatprep.subr.bf16.mxu0 0
    %1958 = vmatpush1.bf16.msra.mxu0 %v1442
    %1959 = vmatprep.subr.bf16.mxu0 0
    %1960 = vmatpush1.bf16.msra.mxu0 %v1443
    %1961 = vmatprep.subr.bf16.mxu0 0
    %1962 = vmatpush1.bf16.msra.mxu0 %v1444
    %1963 = vmatprep.subr.bf16.mxu0 0
    %1964 = vmatpush1.bf16.msra.mxu0 %v1445
    %1965 = vmatprep.mubr.bf16.mxu0 %v526
    %1966 = vmatmul.mubr.bf16.gmra.mrb[0].mxu0 %v524
    %v1967 = vpop.f32.mrb[0].mxu0
    %v1968 = vadd.f32 %v1928, %v1967
    %v1969 = vpop.f32.mrb[0].mxu0
    %v1970 = vpop.f32.mrb[0].mxu0
    %v1971 = vpop.f32.mrb[0].mxu0
    %1972 = vdwg.mxu0
    %1973 = vmatprep.subr.bf16.mxu0 0
    %1974 = vmatpush1.bf16.msra.mxu0 %v1446
    %1975 = vmatprep.subr.bf16.mxu0 0
    %1976 = vmatpush1.bf16.msra.mxu0 %v1447
    %1977 = vmatprep.subr.bf16.mxu0 0
    %1978 = vmatpush1.bf16.msra.mxu0 %v1448
    %1979 = vmatprep.subr.bf16.mxu0 0
    %1980 = vmatpush1.bf16.msra.mxu0 %v1449
    %1981 = vmatprep.subr.bf16.mxu0 0
    %1982 = vmatpush1.bf16.msra.mxu0 %v1450
    %1983 = vmatprep.subr.bf16.mxu0 0
    %1984 = vmatpush1.bf16.msra.mxu0 %v1451
    %1985 = vmatprep.subr.bf16.mxu0 0
    %1986 = vmatpush1.bf16.msra.mxu0 %v1452
    %1987 = vmatprep.subr.bf16.mxu0 0
    %1988 = vmatpush1.bf16.msra.mxu0 %v1453
    %1989 = vmatprep.subr.bf16.mxu0 0
    %1990 = vmatpush1.bf16.msra.mxu0 %v1454
    %1991 = vmatprep.subr.bf16.mxu0 0
    %1992 = vmatpush1.bf16.msra.mxu0 %v1455
    %1993 = vmatprep.subr.bf16.mxu0 0
    %1994 = vmatpush1.bf16.msra.mxu0 %v1456
    %1995 = vmatprep.subr.bf16.mxu0 0
    %1996 = vmatpush1.bf16.msra.mxu0 %v1457
    %1997 = vmatprep.subr.bf16.mxu0 0
    %1998 = vmatpush1.bf16.msra.mxu0 %v1458
    %1999 = vmatprep.subr.bf16.mxu0 0
    %2000 = vmatpush1.bf16.msra.mxu0 %v1459
    %2001 = vmatprep.subr.bf16.mxu0 0
    %2002 = vmatpush1.bf16.msra.mxu0 %v1460
    %2003 = vmatprep.subr.bf16.mxu0 0
    %2004 = vmatpush1.bf16.msra.mxu0 %v1461
    %2005 = vmatprep.mubr.bf16.mxu0 %v523
    %2006 = vmatmul.mubr.bf16.gmra.mrb[0].mxu0 %v509
    %v2007 = vpop.f32.mrb[0].mxu0
    %v2008 = vadd.f32 %v1968, %v2007
    %v2009 = vpop.f32.mrb[0].mxu0
    %v2010 = vpop.f32.mrb[0].mxu0
    %v2011 = vpop.f32.mrb[0].mxu0
    %2012 = vdwg.mxu0
    %2013 = vmatprep.subr.bf16.mxu0 0
    %2014 = vmatpush1.bf16.msra.mxu0 %v1462
    %2015 = vmatprep.subr.bf16.mxu0 0
    %2016 = vmatpush1.bf16.msra.mxu0 %v1463
    %2017 = vmatprep.subr.bf16.mxu0 0
    %2018 = vmatpush1.bf16.msra.mxu0 %v1464
    %2019 = vmatprep.subr.bf16.mxu0 0
    %2020 = vmatpush1.bf16.msra.mxu0 %v1465
    %2021 = vmatprep.subr.bf16.mxu0 0
    %2022 = vmatpush1.bf16.msra.mxu0 %v1466
    %2023 = vmatprep.subr.bf16.mxu0 0
    %2024 = vmatpush1.bf16.msra.mxu0 %v1467
    %2025 = vmatprep.subr.bf16.mxu0 0
    %2026 = vmatpush1.bf16.msra.mxu0 %v1468
    %2027 = vmatprep.subr.bf16.mxu0 0
    %2028 = vmatpush1.bf16.msra.mxu0 %v1469
    %2029 = vmatprep.subr.bf16.mxu0 0
    %2030 = vmatpush1.bf16.msra.mxu0 %v1470
    %2031 = vmatprep.subr.bf16.mxu0 0
    %2032 = vmatpush1.bf16.msra.mxu0 %v1471
    %2033 = vmatprep.subr.bf16.mxu0 0
    %2034 = vmatpush1.bf16.msra.mxu0 %v1472
    %2035 = vmatprep.subr.bf16.mxu0 0
    %2036 = vmatpush1.bf16.msra.mxu0 %v1473
    %2037 = vmatprep.subr.bf16.mxu0 0
    %2038 = vmatpush1.bf16.msra.mxu0 %v1474
    %2039 = vmatprep.subr.bf16.mxu0 0
    %2040 = vmatpush1.bf16.msra.mxu0 %v1475
    %2041 = vmatprep.subr.bf16.mxu0 0
    %2042 = vmatpush1.bf16.msra.mxu0 %v1476
    %2043 = vmatprep.subr.bf16.mxu0 0
    %2044 = vmatpush1.bf16.msra.mxu0 %v1477
    %2045 = vmatprep.mubr.bf16.mxu0 %v527
    %2046 = vmatmul.mubr.bf16.gmra.mrb[0].mxu0 %v525
    %v2047 = vpop.f32.mrb[0].mxu0
    %v2048 = vadd.f32 %v2008, %v2047
    %v2049 = vpop.f32.mrb[0].mxu0
    %v2050 = vpop.f32.mrb[0].mxu0
    %v2051 = vpop.f32.mrb[0].mxu0
    %2052 = vdwg.mxu0
    %2053 = vmatprep.subr.bf16.mxu0 0
    %2054 = vmatpush1.bf16.msra.mxu0 %v1478
    %2055 = vmatprep.subr.bf16.mxu0 0
    %2056 = vmatpush1.bf16.msra.mxu0 %v1479
    %2057 = vmatprep.subr.bf16.mxu0 0
    %2058 = vmatpush1.bf16.msra.mxu0 %v1480
    %2059 = vmatprep.subr.bf16.mxu0 0
    %2060 = vmatpush1.bf16.msra.mxu0 %v1481
    %2061 = vmatprep.subr.bf16.mxu0 0
    %2062 = vmatpush1.bf16.msra.mxu0 %v1482
    %2063 = vmatprep.subr.bf16.mxu0 0
    %2064 = vmatpush1.bf16.msra.mxu0 %v1483
    %2065 = vmatprep.subr.bf16.mxu0 0
    %2066 = vmatpush1.bf16.msra.mxu0 %v1484
    %2067 = vmatprep.subr.bf16.mxu0 0
    %2068 = vmatpush1.bf16.msra.mxu0 %v1485
    %2069 = vmatprep.subr.bf16.mxu0 0
    %2070 = vmatpush1.bf16.msra.mxu0 %v1486
    %2071 = vmatprep.subr.bf16.mxu0 0
    %2072 = vmatpush1.bf16.msra.mxu0 %v1487
    %2073 = vmatprep.subr.bf16.mxu0 0
    %2074 = vmatpush1.bf16.msra.mxu0 %v1488
    %2075 = vmatprep.subr.bf16.mxu0 0
    %2076 = vmatpush1.bf16.msra.mxu0 %v1489
    %2077 = vmatprep.subr.bf16.mxu0 0
    %2078 = vmatpush1.bf16.msra.mxu0 %v1490
    %2079 = vmatprep.subr.bf16.mxu0 0
    %2080 = vmatpush1.bf16.msra.mxu0 %v1491
    %2081 = vmatprep.subr.bf16.mxu0 0
    %2082 = vmatpush1.bf16.msra.mxu0 %v1492
    %2083 = vmatprep.subr.bf16.mxu0 0
    %2084 = vmatpush1.bf16.msra.mxu0 %v1493
    %2085 = vmatprep.mubr.bf16.mxu0 %v565
    %2086 = vmatmul.mubr.bf16.gmra.mrb[0].mxu0 %v551
    %v2087 = vpop.f32.mrb[0].mxu0
    %v2088 = vadd.f32 %v2048, %v2087
    %v2089 = vpop.f32.mrb[0].mxu0
    %v2090 = vpop.f32.mrb[0].mxu0
    %v2091 = vpop.f32.mrb[0].mxu0
    %2092 = vdwg.mxu0
    %2093 = vmatprep.subr.bf16.mxu0 0
    %2094 = vmatpush1.bf16.msra.mxu0 %v1494
    %2095 = vmatprep.subr.bf16.mxu0 0
    %2096 = vmatpush1.bf16.msra.mxu0 %v1495
    %2097 = vmatprep.subr.bf16.mxu0 0
    %2098 = vmatpush1.bf16.msra.mxu0 %v1496
    %2099 = vmatprep.subr.bf16.mxu0 0
    %2100 = vmatpush1.bf16.msra.mxu0 %v1497
    %2101 = vmatprep.subr.bf16.mxu0 0
    %2102 = vmatpush1.bf16.msra.mxu0 %v1498
    %2103 = vmatprep.subr.bf16.mxu0 0
    %2104 = vmatpush1.bf16.msra.mxu0 %v1499
    %2105 = vmatprep.subr.bf16.mxu0 0
    %2106 = vmatpush1.bf16.msra.mxu0 %v1500
    %2107 = vmatprep.subr.bf16.mxu0 0
    %2108 = vmatpush1.bf16.msra.mxu0 %v1501
    %2109 = vmatprep.subr.bf16.mxu0 0
    %2110 = vmatpush1.bf16.msra.mxu0 %v1502
    %2111 = vmatprep.subr.bf16.mxu0 0
    %2112 = vmatpush1.bf16.msra.mxu0 %v1503
    %2113 = vmatprep.subr.bf16.mxu0 0
    %2114 = vmatpush1.bf16.msra.mxu0 %v1504
    %2115 = vmatprep.subr.bf16.mxu0 0
    %2116 = vmatpush1.bf16.msra.mxu0 %v1505
    %2117 = vmatprep.subr.bf16.mxu0 0
    %2118 = vmatpush1.bf16.msra.mxu0 %v1506
    %2119 = vmatprep.subr.bf16.mxu0 0
    %2120 = vmatpush1.bf16.msra.mxu0 %v1507
    %2121 = vmatprep.subr.bf16.mxu0 0
    %2122 = vmatpush1.bf16.msra.mxu0 %v1508
    %2123 = vmatprep.subr.bf16.mxu0 0
    %2124 = vmatpush1.bf16.msra.mxu0 %v1509
    %2125 = vmatprep.mubr.bf16.mxu0 %v575
    %2126 = vmatmul.mubr.bf16.gmra.mrb[0].mxu0 %v573
    %v2127 = vpop.f32.mrb[0].mxu0
    %v2128 = vadd.f32 %v2088, %v2127
    %v2129 = vpop.f32.mrb[0].mxu0
    %v2130 = vpop.f32.mrb[0].mxu0
    %v2131 = vpop.f32.mrb[0].mxu0
    %2132 = vdwg.mxu0
    %2133 = vmatprep.subr.bf16.mxu0 0
    %2134 = vmatpush1.bf16.msra.mxu0 %v1510
    %2135 = vmatprep.subr.bf16.mxu0 0
    %2136 = vmatpush1.bf16.msra.mxu0 %v1511
    %2137 = vmatprep.subr.bf16.mxu0 0
    %2138 = vmatpush1.bf16.msra.mxu0 %v1512
    %2139 = vmatprep.subr.bf16.mxu0 0
    %2140 = vmatpush1.bf16.msra.mxu0 %v1513
    %2141 = vmatprep.subr.bf16.mxu0 0
    %2142 = vmatpush1.bf16.msra.mxu0 %v1514
    %2143 = vmatprep.subr.bf16.mxu0 0
    %2144 = vmatpush1.bf16.msra.mxu0 %v1515
    %2145 = vmatprep.subr.bf16.mxu0 0
    %2146 = vmatpush1.bf16.msra.mxu0 %v1516
    %2147 = vmatprep.subr.bf16.mxu0 0
    %2148 = vmatpush1.bf16.msra.mxu0 %v1517
    %2149 = vmatprep.subr.bf16.mxu0 0
    %2150 = vmatpush1.bf16.msra.mxu0 %v1518
    %2151 = vmatprep.subr.bf16.mxu0 0
    %2152 = vmatpush1.bf16.msra.mxu0 %v1519
    %2153 = vmatprep.subr.bf16.mxu0 0
    %2154 = vmatpush1.bf16.msra.mxu0 %v1520
    %2155 = vmatprep.subr.bf16.mxu0 0
    %2156 = vmatpush1.bf16.msra.mxu0 %v1521
    %2157 = vmatprep.subr.bf16.mxu0 0
    %2158 = vmatpush1.bf16.msra.mxu0 %v1522
    %2159 = vmatprep.subr.bf16.mxu0 0
    %2160 = vmatpush1.bf16.msra.mxu0 %v1523
    %2161 = vmatprep.subr.bf16.mxu0 0
    %2162 = vmatpush1.bf16.msra.mxu0 %v1524
    %2163 = vmatprep.subr.bf16.mxu0 0
    %2164 = vmatpush1.bf16.msra.mxu0 %v1525
    %2165 = vmatprep.mubr.bf16.mxu0 %v572
    %2166 = vmatmul.mubr.bf16.gmra.mrb[0].mxu0 %v558
    %v2167 = vpop.f32.mrb[0].mxu0
    %v2168 = vadd.f32 %v2128, %v2167
    %v2169 = vpop.f32.mrb[0].mxu0
    %v2170 = vpop.f32.mrb[0].mxu0
    %v2171 = vpop.f32.mrb[0].mxu0
    %2172 = vdwg.mxu0
    %2173 = vmatprep.subr.bf16.mxu0 0
    %2174 = vmatpush1.bf16.msra.mxu0 %v1526
    %2175 = vmatprep.subr.bf16.mxu0 0
    %2176 = vmatpush1.bf16.msra.mxu0 %v1527
    %2177 = vmatprep.subr.bf16.mxu0 0
    %2178 = vmatpush1.bf16.msra.mxu0 %v1528
    %2179 = vmatprep.subr.bf16.mxu0 0
    %2180 = vmatpush1.bf16.msra.mxu0 %v1529
    %2181 = vmatprep.subr.bf16.mxu0 0
    %2182 = vmatpush1.bf16.msra.mxu0 %v1530
    %2183 = vmatprep.subr.bf16.mxu0 0
    %2184 = vmatpush1.bf16.msra.mxu0 %v1531
    %2185 = vmatprep.subr.bf16.mxu0 0
    %2186 = vmatpush1.bf16.msra.mxu0 %v1532
    %2187 = vmatprep.subr.bf16.mxu0 0
    %2188 = vmatpush1.bf16.msra.mxu0 %v1533
    %2189 = vmatprep.subr.bf16.mxu0 0
    %2190 = vmatpush1.bf16.msra.mxu0 %v1534
    %2191 = vmatprep.subr.bf16.mxu0 0
    %2192 = vmatpush1.bf16.msra.mxu0 %v1535
    %2193 = vmatprep.subr.bf16.mxu0 0
    %2194 = vmatpush1.bf16.msra.mxu0 %v1536
    %2195 = vmatprep.subr.bf16.mxu0 0
    %2196 = vmatpush1.bf16.msra.mxu0 %v1731
    %2197 = vmatprep.subr.bf16.mxu0 0
    %2198 = vmatpush1.bf16.msra.mxu0 0
    %2199 = vmatprep.subr.bf16.mxu0 0
    %2200 = vmatpush1.bf16.msra.mxu0 0
    %2201 = vmatprep.subr.bf16.mxu0 0
    %2202 = vmatpush1.bf16.msra.mxu0 0
    %2203 = vmatprep.subr.bf16.mxu0 0
    %2204 = vmatpush1.bf16.msra.mxu0 0
    %2205 = vmatprep.mubr.bf16.mxu0 %v1727
    %2206 = vmatmul.mubr.bf16.gmra.mrb[0].mxu0 %v574
    %v2207 = vpop.f32.mrb[0].mxu0
    %v2208 = vadd.f32 %v2168, %v2207
    %v2209 = vpop.f32.mrb[0].mxu0
    %v2210 = vpop.f32.mrb[0].mxu0
    %v2211 = vpop.f32.mrb[0].mxu0
    %2212 = vdwg.mxu0
    %v2213 = vtanh.pop %v2208
    %v2214 = vld [vmem:[#allocation5 + $0x8] sm:$0xff]
    %v2215 = vld [vmem:[#allocation5 + $0x10] sm:$0xff]
    %v2216 = vld [vmem:[#allocation5 + $0x18] sm:$0xff]
    %v2217 = vld [vmem:[#allocation5 + $0x20] sm:$0xff]
    %v2218 = vld [vmem:[#allocation5 + $0x28] sm:$0xff]
    %v2219 = vld [vmem:[#allocation5 + $0x30] sm:$0xff]
    %v2220 = vld [vmem:[#allocation5 + $0x38] sm:$0xff]
    %v2221 = vld [vmem:[#allocation5 + $0x40] sm:$0xff]
    %v2222 = vld [vmem:[#allocation5 + $0x48] sm:$0xff]
    %v2223 = vld [vmem:[#allocation5 + $0x50] sm:$0xff]
    %v2224 = vld [vmem:[#allocation5 + $0x58] sm:$0xff]
    %v2225 = vld [vmem:[#allocation5 + $0x60] sm:$0xff]
    %v2226 = vld [vmem:[#allocation5 + $0x68] sm:$0xff]
    %v2227 = vld [vmem:[#allocation5 + $0x70] sm:$0xff]
    %v2228 = vld [vmem:[#allocation5 + $0x78] sm:$0xff]
    %v2229 = vld [vmem:[#allocation5 + $0x80] sm:$0xff]
    %v2230 = vld [vmem:[#allocation5 + $0x88] sm:$0x1]
    %v2231 = vlaneseq
    %v2232 = vshrl.u32 %v2231, 7
    %v2233 = vsub.s32 0, %v2232
    %v2234 = vrot.slane %v2230, %v2233
    %2235 = vmatprep.subr.mxu0 0.0
    %2236 = vmatpush1.msra.mxu0 %v2214
    %2237 = vmatprep.subr.mxu0 0.0
    %2238 = vmatpush1.msra.mxu0 %v2215
    %2239 = vmatprep.subr.mxu0 0.0
    %2240 = vmatpush1.msra.mxu0 %v2216
    %2241 = vmatprep.subr.mxu0 0.0
    %2242 = vmatpush1.msra.mxu0 %v2217
    %2243 = vmatprep.subr.mxu0 0.0
    %2244 = vmatpush1.msra.mxu0 %v2218
    %2245 = vmatprep.subr.mxu0 0.0
    %2246 = vmatpush1.msra.mxu0 %v2219
    %2247 = vmatprep.subr.mxu0 0.0
    %2248 = vmatpush1.msra.mxu0 %v2220
    %2249 = vmatprep.subr.mxu0 0.0
    %2250 = vmatpush1.msra.mxu0 %v2221
    %2251 = vmatprep.subr.mxu0 0.0
    %2252 = vmatpush1.msra.mxu0 %v2222
    %2253 = vmatprep.subr.mxu0 0.0
    %2254 = vmatpush1.msra.mxu0 %v2223
    %2255 = vmatprep.subr.mxu0 0.0
    %2256 = vmatpush1.msra.mxu0 %v2224
    %2257 = vmatprep.subr.mxu0 0.0
    %2258 = vmatpush1.msra.mxu0 %v2225
    %2259 = vmatprep.subr.mxu0 0.0
    %2260 = vmatpush1.msra.mxu0 %v2226
    %2261 = vmatprep.subr.mxu0 0.0
    %2262 = vmatpush1.msra.mxu0 %v2227
    %2263 = vmatprep.subr.mxu0 0.0
    %2264 = vmatpush1.msra.mxu0 %v2228
    %2265 = vmatprep.subr.mxu0 0.0
    %2266 = vmatpush1.msra.mxu0 %v2229
    %2267 = vmatprep.subr.mxu0 0.0
    %2268 = vmatpush1.msra.mxu0 0.0
    %2269 = vmatprep.subr.mxu0 0.0
    %2270 = vmatpush1.msra.mxu0 0.0
    %2271 = vmatprep.subr.mxu0 0.0
    %2272 = vmatpush1.msra.mxu0 0.0
    %2273 = vmatprep.subr.mxu0 0.0
    %2274 = vmatpush1.msra.mxu0 0.0
    %2275 = vmatprep.subr.mxu0 0.0
    %2276 = vmatpush1.msra.mxu0 0.0
    %2277 = vmatprep.subr.mxu0 0.0
    %2278 = vmatpush1.msra.mxu0 0.0
    %2279 = vmatprep.subr.mxu0 0.0
    %2280 = vmatpush1.msra.mxu0 0.0
    %2281 = vmatprep.subr.mxu0 0.0
    %2282 = vmatpush1.msra.mxu0 0.0
    %2283 = vmatprep.subr.mxu0 0.0
    %2284 = vmatpush1.msra.mxu0 0.0
    %2285 = vmatprep.subr.mxu0 0.0
    %2286 = vmatpush1.msra.mxu0 0.0
    %2287 = vmatprep.subr.mxu0 0.0
    %2288 = vmatpush1.msra.mxu0 0.0
    %2289 = vmatprep.subr.mxu0 0.0
    %2290 = vmatpush1.msra.mxu0 0.0
    %2291 = vmatprep.subr.mxu0 0.0
    %2292 = vmatpush1.msra.mxu0 0.0
    %2293 = vmatprep.subr.mxu0 0.0
    %2294 = vmatpush1.msra.mxu0 0.0
    %2295 = vmatprep.subr.mxu0 0.0
    %2296 = vmatpush1.msra.mxu0 0.0
    %2297 = vmatprep.subr.mxu0 0.0
    %2298 = vmatpush1.msra.mxu0 0.0
    %2299 = vmatprep.mubr.f32.mxu0 0.0
    %2300 = vmatmul.mubr.f32.gmra.mrb[0].mxu0 %v2213
    %v2301 = vpop.f32.mrb[0].mxu0
    %v2302 = vadd.f32 %v2234, %v2301
    %v2303 = vpop.f32.mrb[0].mxu0
    %2304 = vdwg.mxu0
    %v2305 = vtanh.pop %v2302
    %v2306 = vld [vmem:[#allocation5 + $0x90] sm:$0xff]
    %v2307 = vld [vmem:[#allocation5 + $0x98] sm:$0xff]
    %v2308 = vld [vmem:[#allocation5 + $0xa0] sm:$0xff]
    %v2309 = vld [vmem:[#allocation5 + $0xa8] sm:$0xff]
    %v2310 = vld [vmem:[#allocation5 + $0xb0] sm:$0xff]
    %v2311 = vld [vmem:[#allocation5 + $0xb8] sm:$0xff]
    %v2312 = vld [vmem:[#allocation5 + $0xc0] sm:$0xff]
    %v2313 = vld [vmem:[#allocation5 + $0xc8] sm:$0xff]
    %v2314 = vld [vmem:[#allocation5 + $0xd0] sm:$0x1]
    %v2315 = vlaneseq
    %v2316 = vshrl.u32 %v2315, 7
    %v2317 = vsub.s32 0, %v2316
    %v2318 = vrot.slane %v2314, %v2317
    %vm2319 = vcmask 523264
    %v2321 = vsel %vm2319, %v2305, 0
    %2323 = vmatprep.subr.mxu0 0.0
    %2324 = vmatpush1.msra.mxu0 %v2306
    %2325 = vmatprep.subr.mxu0 0.0
    %2326 = vmatpush1.msra.mxu0 %v2307
    %2327 = vmatprep.subr.mxu0 0.0
    %2328 = vmatpush1.msra.mxu0 %v2308
    %2329 = vmatprep.subr.mxu0 0.0
    %2330 = vmatpush1.msra.mxu0 %v2309
    %2331 = vmatprep.subr.mxu0 0.0
    %2332 = vmatpush1.msra.mxu0 %v2310
    %2333 = vmatprep.subr.mxu0 0.0
    %2334 = vmatpush1.msra.mxu0 %v2311
    %2335 = vmatprep.subr.mxu0 0.0
    %2336 = vmatpush1.msra.mxu0 %v2312
    %2337 = vmatprep.subr.mxu0 0.0
    %2338 = vmatpush1.msra.mxu0 %v2313
    %2339 = vmatprep.subr.mxu0 0.0
    %2340 = vmatpush1.msra.mxu0 0.0
    %2341 = vmatprep.subr.mxu0 0.0
    %2342 = vmatpush1.msra.mxu0 0.0
    %2343 = vmatprep.subr.mxu0 0.0
    %2344 = vmatpush1.msra.mxu0 0.0
    %2345 = vmatprep.subr.mxu0 0.0
    %2346 = vmatpush1.msra.mxu0 0.0
    %2347 = vmatprep.subr.mxu0 0.0
    %2348 = vmatpush1.msra.mxu0 0.0
    %2349 = vmatprep.subr.mxu0 0.0
    %2350 = vmatpush1.msra.mxu0 0.0
    %2351 = vmatprep.subr.mxu0 0.0
    %2352 = vmatpush1.msra.mxu0 0.0
    %2353 = vmatprep.subr.mxu0 0.0
    %2354 = vmatpush1.msra.mxu0 0.0
    %2355 = vmatprep.subr.mxu0 0.0
    %2356 = vmatpush1.msra.mxu0 0.0
    %2357 = vmatprep.subr.mxu0 0.0
    %2358 = vmatpush1.msra.mxu0 0.0
    %2359 = vmatprep.subr.mxu0 0.0
    %2360 = vmatpush1.msra.mxu0 0.0
    %2361 = vmatprep.subr.mxu0 0.0
    %2362 = vmatpush1.msra.mxu0 0.0
    %2363 = vmatprep.subr.mxu0 0.0
    %2364 = vmatpush1.msra.mxu0 0.0
    %2365 = vmatprep.subr.mxu0 0.0
    %2366 = vmatpush1.msra.mxu0 0.0
    %2367 = vmatprep.subr.mxu0 0.0
    %2368 = vmatpush1.msra.mxu0 0.0
    %2369 = vmatprep.subr.mxu0 0.0
    %2370 = vmatpush1.msra.mxu0 0.0
    %2371 = vmatprep.subr.mxu0 0.0
    %2372 = vmatpush1.msra.mxu0 0.0
    %2373 = vmatprep.subr.mxu0 0.0
    %2374 = vmatpush1.msra.mxu0 0.0
    %2375 = vmatprep.subr.mxu0 0.0
    %2376 = vmatpush1.msra.mxu0 0.0
    %2377 = vmatprep.subr.mxu0 0.0
    %2378 = vmatpush1.msra.mxu0 0.0
    %2379 = vmatprep.subr.mxu0 0.0
    %2380 = vmatpush1.msra.mxu0 0.0
    %2381 = vmatprep.subr.mxu0 0.0
    %2382 = vmatpush1.msra.mxu0 0.0
    %2383 = vmatprep.subr.mxu0 0.0
    %2384 = vmatpush1.msra.mxu0 0.0
    %2385 = vmatprep.subr.mxu0 0.0
    %2386 = vmatpush1.msra.mxu0 0.0
    %2387 = vmatprep.mubr.f32.mxu0 0.0
    %2388 = vmatmul.mubr.f32.gmra.mrb[0].mxu0 %v2321
    %v2389 = vpop.f32.mrb[0].mxu0
    %v2390 = vadd.f32 %v2318, %v2389
    %v2391 = vpop.f32.mrb[0].mxu0
    %2392 = vdwg.mxu0
    %vm2393 = vcmask 25600
    %2394 = vst.msk [vmem:[#allocation7] sm:$0x3] %vm2393, %v2390
    // Predicated region
    $region22: #{model_forward.1} parent=1 // pred_check
      _
    $region23: #{model_forward.1} parent=1 // pred_check_branch
      %2396 = sbr.rel (0) target = $region25
    $region24: #{model_forward.1} parent=1 // pred_region
      %s2398 = ssub.s32 32, 32
      %2399 = vsyncadd [#allocation4], %s2398
      %s2401 = sshll.u32 [#allocation7], 4
      %s2402 = int_to_ptr.vmem [resolvable:$true] %s2401
      %2404 = dma.vmem_to_hbm [thread:$0]  %s2402, 32, %s3, [#allocation4]
    $region25: #{model_forward.1} parent=1 // pred_fallthru
      _
    // Predicated region
    $region26: #{model_forward.1} parent=1 // pred_check
      _
    $region27: #{model_forward.1} parent=1 // pred_check_branch
      %2406 = sbr.rel (0) target = $region29
    $region28: #{model_forward.1} parent=1 // pred_region
      %2407 = dma.done [#allocation4], 32
    $region29: #{model_forward.1} parent=1 // pred_fallthru
      _
    %2408 = vsyncpa [#allocation3], 1
    %2409 = vsyncpa [#allocation6], 1
    %2410 = vsyncpa [#allocation4], 1

</llo_original>
